<compile_context>
chip_gen: v7x
topology: tpu7x:2x2x1
jax: 0.10.0
libtpu: 0.0.40
codegen_flags: <defaults>
</compile_context>

<pallas_src>
import jax
import jax.numpy as jnp
from jax.experimental import pallas as pl
from jax.experimental.pallas import tpu as pltpu

LATENT_DIM = 20
HIDDEN = 400
HIDDEN_PAD = 512          # 4 x 128 -> dense MXU / vreg tiles
OUT = 784                 # 28 * 28
OUT_PAD = 896             # 7 x 128 -> unmasked lane-dense output stores
BATCH_TILE = 16           # bf16 output: keep batch tiles multiples of 16 (sublane pack)
MAX_BATCH_BLOCK = 1024    # caps per-block VMEM (~12 MiB) while amortizing step overhead


def decoder_kernel(lat_ref, w1_ref, b1_ref, w2_ref, b2_ref, out_ref):
    # lat_ref: (3, TB, LATENT_DIM) packed as [mean, log_std, eps], f32.
    mean = lat_ref[0]
    log_std = lat_ref[1]
    eps = lat_ref[2]

    # Reparameterization trick (VPU + EUP exp), f32.
    z = mean + jnp.exp(log_std) * eps

    # Linear(20 -> 512[=400 zero-padded]) + ReLU.
    # bf16 operands (single MXU pass), f32 accumulation, f32 bias.
    h = jnp.dot(z.astype(jnp.bfloat16), w1_ref[...],
                preferred_element_type=jnp.float32) + b1_ref[...]
    h = jnp.maximum(h, 0.0)

    # Linear(512 -> 896[=784 zero-padded]); bf16 operands, f32 accumulation.
    y = jnp.dot(h.astype(jnp.bfloat16), w2_ref[...],
                preferred_element_type=jnp.float32) + b2_ref[...]

    # Sigmoid = 1 / (1 + exp(-y)) via EUP exp + EUP approx reciprocal
    # (keeps the divide off the VALU slot).
    sig = pl.reciprocal(1.0 + jnp.exp(-y), approx=True)

    # bf16 store -> half the output writeback traffic.
    out_ref[...] = sig.astype(out_ref.dtype)


def prepare_params(w1, b1, w2, b2):
    """Zero-pad weights/biases to lane-aligned shapes; weights stored in bf16.

    Padded hidden columns/rows and padded output columns are exactly zero, so
    ReLU of the pad lanes is 0 and padded output columns are sliced off ->
    logical results are unchanged (up to bf16 matmul rounding).
    """
    w1p = jnp.zeros((LATENT_DIM, HIDDEN_PAD), jnp.bfloat16).at[:, :HIDDEN].set(
        w1.astype(jnp.bfloat16))
    b1p = jnp.zeros((1, HIDDEN_PAD), jnp.float32).at[:, :HIDDEN].set(b1)
    w2p = jnp.zeros((HIDDEN_PAD, OUT_PAD), jnp.bfloat16).at[:HIDDEN, :OUT].set(
        w2.astype(jnp.bfloat16))
    b2p = jnp.zeros((1, OUT_PAD), jnp.float32).at[:, :OUT].set(b2)
    return w1p, b1p, w2p, b2p


def _round_up(x, m):
    return (x + m - 1) // m * m


def _batch_blocking(B):
    Bt = _round_up(B, BATCH_TILE)
    if Bt >= 2 * BATCH_TILE:
        # >= 2 grid blocks so ("parallel",) can shard the batch across v7x's
        # two TensorCores (no-op on v5e / v6e, which have one TC).
        tb = _round_up(pl.cdiv(Bt, 2), BATCH_TILE)
    else:
        tb = Bt
    tb = min(tb, MAX_BATCH_BLOCK)
    num_blocks = pl.cdiv(Bt, tb)
    return tb, num_blocks, num_blocks * tb


def decoder_forward_flat(packed, w1p, b1p, w2p, b2p):
    """Decoder on pre-packed latents (3, B, 20) -> lane-dense (Bp, 896) bf16.

    Rows [B:Bp) and columns [784:896) are padding (they contain sigmoid(0)=0.5);
    downstream consumers must slice/ignore them.  Prefer consuming this buffer
    directly to avoid an extra HBM round trip for a slice+reshape.
    """
    _, B, _ = packed.shape
    tb, num_blocks, Bp = _batch_blocking(B)
    if Bp != B:
        packed = jnp.pad(packed, ((0, 0), (0, Bp - B), (0, 0)))

    return pl.pallas_call(
        decoder_kernel,
        out_shape=jax.ShapeDtypeStruct((Bp, OUT_PAD), jnp.bfloat16),
        grid=(num_blocks,),
        in_specs=[
            # Batch-blocked packed latents: one DMA per block.
            pl.BlockSpec((3, tb, LATENT_DIM), lambda i: (0, i, 0)),
            # Weights / biases: constant index_map -> fetched once, VMEM-resident.
            pl.BlockSpec((LATENT_DIM, HIDDEN_PAD), lambda i: (0, 0)),
            pl.BlockSpec((1, HIDDEN_PAD), lambda i: (0, 0)),
            pl.BlockSpec((HIDDEN_PAD, OUT_PAD), lambda i: (0, 0)),
            pl.BlockSpec((1, OUT_PAD), lambda i: (0, 0)),
        ],
        out_specs=pl.BlockSpec((tb, OUT_PAD), lambda i: (i, 0)),
        compiler_params=pltpu.CompilerParams(
            dimension_semantics=("parallel",)),
    )(packed, w1p, b1p, w2p, b2p)


def decoder_forward(mean, log_std, eps, w1p, b1p, w2p, b2p):
    # If mean/log_std/eps come from an upstream JAX/Pallas op, emit them
    # already packed as (3, B, 20) and call decoder_forward_flat directly to
    # skip both this stack and the final slice/reshape copy.
    packed = jnp.stack([mean, log_std, eps], axis=0)      # (3, B, LATENT_DIM)
    flat = decoder_forward_flat(packed, w1p, b1p, w2p, b2p)
    B = mean.shape[0]
    # Layout plumbing only: match the PyTorch module's (-1, 1, 28, 28) output.
    return flat[:B, :OUT].reshape(-1, 1, 28, 28)


def reference_forward(mean, log_std, eps, w1, b1, w2, b2):
    # Mirrors the kernel's matmul dtypes (bf16 operands, f32 accumulation) on
    # the unpadded logical shapes; exact f32 sigmoid (kernel uses approx recip
    # + bf16 output, covered by the comparison tolerance).
    z = mean + jnp.exp(log_std) * eps
    h = jnp.maximum(
        jnp.dot(z.astype(jnp.bfloat16), w1.astype(jnp.bfloat16),
                preferred_element_type=jnp.float32) + b1, 0.0)
    y = jnp.dot(h.astype(jnp.bfloat16), w2.astype(jnp.bfloat16),
                preferred_element_type=jnp.float32) + b2
    return jax.nn.sigmoid(y).reshape(-1, 1, 28, 28)


if __name__ == "__main__":
    key = jax.random.PRNGKey(0)
    k_mean, k_lstd, k_eps, k_w1, k_b1, k_w2, k_b2 = jax.random.split(key, 7)

    B = 8
    mean = jax.random.normal(k_mean, (B, LATENT_DIM), dtype=jnp.float32)
    log_std = 0.1 * jax.random.normal(k_lstd, (B, LATENT_DIM), dtype=jnp.float32)
    # eps = randn_like(std): sampled deterministically in plain JAX (glue) and
    # passed into the kernel so the result is checkable against the reference.
    # TODO(synk): could instead draw eps in-kernel with pltpu.prng_seed/prng_random_bits.
    eps = jax.random.normal(k_eps, (B, LATENT_DIM), dtype=jnp.float32)

    # Deterministic params (nn.Linear(20,400), nn.Linear(400,784)), stored (in, out).
    w1 = 0.05 * jax.random.normal(k_w1, (LATENT_DIM, HIDDEN), dtype=jnp.float32)
    b1 = 0.05 * jax.random.normal(k_b1, (HIDDEN,), dtype=jnp.float32)
    w2 = 0.05 * jax.random.normal(k_w2, (HIDDEN, OUT), dtype=jnp.float32)
    b2 = 0.05 * jax.random.normal(k_b2, (OUT,), dtype=jnp.float32)

    params = prepare_params(w1, b1, w2, b2)

    out = decoder_forward(mean, log_std, eps, *params)
    out = jax.block_until_ready(out)

    ref = reference_forward(mean, log_std, eps, w1, b1, w2, b2)
    assert out.shape == (B, 1, 28, 28), out.shape
    assert jnp.allclose(out.astype(jnp.float32), ref, atol=1e-2, rtol=1e-2), \
        "mismatch vs reference"

    print("KERNEL_OK")
</pallas_src>

<mosaic_0001>
module attributes {stable_mosaic.version = 11 : i64} {
  func.func @decoder_kernel(%arg0: i32, %arg1: memref<3x16x20xf32, #tpu.memory_space<vmem>>, %arg2: memref<20x512xbf16, #tpu.memory_space<vmem>>, %arg3: memref<1x512xf32, #tpu.memory_space<vmem>>, %arg4: memref<512x896xbf16, #tpu.memory_space<vmem>>, %arg5: memref<1x896xf32, #tpu.memory_space<vmem>>, %arg6: memref<16x896xbf16, #tpu.memory_space<vmem>>) attributes {dimension_semantics = [#tpu.dimension_semantics<parallel>], iteration_bounds = array<i64: 1>, scalar_prefetch = 0 : i64, scratch_operands = 0 : i64, tpu.core_type = #tpu.core_type<tc>, window_params = [{transform_indices = @transform_0, window_bounds = array<i64: 3, 16, 20>}, {pipeline_mode = #tpu.pipeline_mode<synchronous>, transform_indices = @transform_1, window_bounds = array<i64: 20, 512>}, {pipeline_mode = #tpu.pipeline_mode<synchronous>, transform_indices = @transform_2, window_bounds = array<i64: 1, 512>}, {pipeline_mode = #tpu.pipeline_mode<synchronous>, transform_indices = @transform_3, window_bounds = array<i64: 512, 896>}, {pipeline_mode = #tpu.pipeline_mode<synchronous>, transform_indices = @transform_4, window_bounds = array<i64: 1, 896>}, {transform_indices = @transform_5, window_bounds = array<i64: 16, 896>}]} {
    %c0 = arith.constant 0 : index
    %c0_0 = arith.constant 0 : index
    %c0_1 = arith.constant 0 : index
    %0 = vector.load %arg1[%c0, %c0_0, %c0_1] : memref<3x16x20xf32, #tpu.memory_space<vmem>>, vector<1x16x20xf32>
    %1 = vector.shape_cast %0 : vector<1x16x20xf32> to vector<16x20xf32>
    %c1 = arith.constant 1 : index
    %c0_2 = arith.constant 0 : index
    %c0_3 = arith.constant 0 : index
    %2 = vector.load %arg1[%c1, %c0_2, %c0_3] : memref<3x16x20xf32, #tpu.memory_space<vmem>>, vector<1x16x20xf32>
    %3 = vector.shape_cast %2 : vector<1x16x20xf32> to vector<16x20xf32>
    %c2 = arith.constant 2 : index
    %c0_4 = arith.constant 0 : index
    %c0_5 = arith.constant 0 : index
    %4 = vector.load %arg1[%c2, %c0_4, %c0_5] : memref<3x16x20xf32, #tpu.memory_space<vmem>>, vector<1x16x20xf32>
    %5 = vector.shape_cast %4 : vector<1x16x20xf32> to vector<16x20xf32>
    %6 = math.exp %3 : vector<16x20xf32>
    %7 = arith.mulf %6, %5 : vector<16x20xf32>
    %8 = arith.addf %1, %7 : vector<16x20xf32>
    %9 = arith.truncf %8 : vector<16x20xf32> to vector<16x20xbf16>
    %c0_6 = arith.constant 0 : index
    %c0_7 = arith.constant 0 : index
    %10 = vector.load %arg2[%c0_6, %c0_7] : memref<20x512xbf16, #tpu.memory_space<vmem>>, vector<20x512xbf16>
    %cst = arith.constant dense<0.000000e+00> : vector<16x512xf32>
    %11 = tpu.matmul %9, %10, %cst {dimension_numbers = #tpu.dot_dimension_numbers<[1], [0], [0], [1], [0, 0, 1, 1], [], []>} : vector<16x20xbf16>, vector<20x512xbf16>, vector<16x512xf32> -> vector<16x512xf32>
    %c0_8 = arith.constant 0 : index
    %c0_9 = arith.constant 0 : index
    %12 = vector.load %arg3[%c0_8, %c0_9] : memref<1x512xf32, #tpu.memory_space<vmem>>, vector<1x512xf32>
    %13 = vector.broadcast %12 : vector<1x512xf32> to vector<16x512xf32>
    %14 = arith.addf %11, %13 : vector<16x512xf32>
    %cst_10 = arith.constant 0.000000e+00 : f32
    %15 = vector.broadcast %cst_10 : f32 to vector<16x512xf32>
    %16 = arith.maximumf %14, %15 : vector<16x512xf32>
    %17 = arith.truncf %16 : vector<16x512xf32> to vector<16x512xbf16>
    %c0_11 = arith.constant 0 : index
    %c0_12 = arith.constant 0 : index
    %18 = vector.load %arg4[%c0_11, %c0_12] : memref<512x896xbf16, #tpu.memory_space<vmem>>, vector<512x896xbf16>
    %cst_13 = arith.constant dense<0.000000e+00> : vector<16x896xf32>
    %19 = tpu.matmul %17, %18, %cst_13 {dimension_numbers = #tpu.dot_dimension_numbers<[1], [0], [0], [1], [0, 0, 1, 1], [], []>} : vector<16x512xbf16>, vector<512x896xbf16>, vector<16x896xf32> -> vector<16x896xf32>
    %c0_14 = arith.constant 0 : index
    %c0_15 = arith.constant 0 : index
    %20 = vector.load %arg5[%c0_14, %c0_15] : memref<1x896xf32, #tpu.memory_space<vmem>>, vector<1x896xf32>
    %21 = vector.broadcast %20 : vector<1x896xf32> to vector<16x896xf32>
    %22 = arith.addf %19, %21 : vector<16x896xf32>
    %cst_16 = arith.constant 0.000000e+00 : f32
    %23 = vector.broadcast %cst_16 : f32 to vector<16x896xf32>
    %24 = arith.subf %23, %22 : vector<16x896xf32>
    %25 = math.exp %24 : vector<16x896xf32>
    %cst_17 = arith.constant 1.000000e+00 : f32
    %26 = vector.broadcast %cst_17 : f32 to vector<16x896xf32>
    %27 = arith.addf %26, %25 : vector<16x896xf32>
    %28 = tpu.reciprocal %27 {approx = true} : vector<16x896xf32> -> vector<16x896xf32>
    %29 = arith.truncf %28 : vector<16x896xf32> to vector<16x896xbf16>
    %c0_18 = arith.constant 0 : index
    %c0_19 = arith.constant 0 : index
    %30 = vector.load %arg6[%c0_18, %c0_19] : memref<16x896xbf16, #tpu.memory_space<vmem>>, vector<16x896xbf16>
    tpu.vector_store %arg6[%c0_18, %c0_19], %29 {strides = array<i32>} : memref<16x896xbf16, #tpu.memory_space<vmem>>, vector<16x896xbf16>,
    return
  }
  func.func @transform_0(%arg0: i32) -> (i32, i32, i32) {
    %c0_i32 = arith.constant 0 : i32
    %c0_i32_0 = arith.constant 0 : i32
    %c0_i32_1 = arith.constant 0 : i32
    return %c0_i32, %arg0, %c0_i32_0 : i32, i32, i32
  }
  func.func @transform_1(%arg0: i32) -> (i32, i32) {
    %c0_i32 = arith.constant 0 : i32
    %c0_i32_0 = arith.constant 0 : i32
    %c0_i32_1 = arith.constant 0 : i32
    return %c0_i32, %c0_i32_0 : i32, i32
  }
  func.func @transform_2(%arg0: i32) -> (i32, i32) {
    %c0_i32 = arith.constant 0 : i32
    %c0_i32_0 = arith.constant 0 : i32
    %c0_i32_1 = arith.constant 0 : i32
    return %c0_i32, %c0_i32_0 : i32, i32
  }
  func.func @transform_3(%arg0: i32) -> (i32, i32) {
    %c0_i32 = arith.constant 0 : i32
    %c0_i32_0 = arith.constant 0 : i32
    %c0_i32_1 = arith.constant 0 : i32
    return %c0_i32, %c0_i32_0 : i32, i32
  }
  func.func @transform_4(%arg0: i32) -> (i32, i32) {
    %c0_i32 = arith.constant 0 : i32
    %c0_i32_0 = arith.constant 0 : i32
    %c0_i32_1 = arith.constant 0 : i32
    return %c0_i32, %c0_i32_0 : i32, i32
  }
  func.func @transform_5(%arg0: i32) -> (i32, i32) {
    %c0_i32 = arith.constant 0 : i32
    %c0_i32_0 = arith.constant 0 : i32
    return %arg0, %c0_i32 : i32, i32
  }
}

</mosaic_0001>

<llo_original>
// kernel: tpu_custom_call.1
$region0: #{tpu_custom_call.1}
  #allocation0 [shape = 'u32[]', space=smem, size = 0x4, offset = 0x4, fixed_abs, tag = 'smem constant byte address 0x4 - core index']
  #allocation1 [shape = 'u32[144,128]{1,0:T(1,128)}', space=vmem, size = 0x12000, scoped, tag = 'internal scratch']
  %s0 = inlined_call_operand.hbm [shape: f32[3,16,20], index: 0, kind: input, shape index: {}]
  %s1 = inlined_call_operand.hbm [shape: bf16[20,512], index: 1, kind: input, shape index: {}]
  %s2 = inlined_call_operand.vmem [shape: f32[1,512], index: 2, kind: input, shape index: {}]
  %s3 = inlined_call_operand.hbm [shape: bf16[512,896], index: 3, kind: input, shape index: {}]
  %s4 = inlined_call_operand.vmem [shape: f32[1,896], index: 4, kind: input, shape index: {}]
  %s5 = inlined_call_operand.hbm [shape: bf16[16,896], index: 5, kind: output, shape index: {}]
  %s6 = sld [smem:[#allocation0]]
  $region42: #{tpu_custom_call.1} parent=0
    _
  %s8 = ssub.s32 1, %s6
  %s9 = scalar_select 0, %s8, %s6
  $region1: #{tpu_custom_call.1} parent=0
    #allocation2 [shape = 'u8[24576]{0}', space=vmem, size = 0x6000, scoped, tag = 'input window, operand 0, single buffered']
    #allocation3 [shape = 's32[1]{0}', space=sflag, size = 0x4, scoped, tag = 'scoped memory for tpu_custom_call.1']
    #allocation4 [shape = 's32[1]{0}', space=sflag, size = 0x4, scoped, tag = 'scoped memory for tpu_custom_call.1']
    #allocation5 [shape = 'u8[24576]{0}', space=vmem, size = 0x6000, scoped, tag = 'input window, operand 1, single buffered']
    #allocation6 [shape = 's32[1]{0}', space=sflag, size = 0x4, scoped, tag = 'scoped memory for tpu_custom_call.1']
    #allocation7 [shape = 'u8[917504]{0}', space=vmem, size = 0xe0000, scoped, tag = 'input window, operand 3, single buffered']
    #allocation8 [shape = 'u8[28672]{0}', space=vmem, size = 0x7000, scoped, tag = 'output window, operand 0, single buffered']
    %10 = vsyncpa [#allocation3], 0
    %11 = vsyncpa [#allocation6], 0
    %12 = vsyncpa [#allocation4], 0
    // Predicated region
    $region2: #{tpu_custom_call.1} parent=1 // pred_check
      _
    $region3: #{tpu_custom_call.1} parent=1 // pred_check_branch
      %14 = sbr.rel (0) target = $region5
    $region4: #{tpu_custom_call.1} parent=1 // pred_region
      %s16 = ssub.s32 768, 768
      %17 = vsyncadd [#allocation3], %s16
      %s18 = sshll.u32 [#allocation2], 4
      %s19 = int_to_ptr.vmem [resolvable:$true] %s18
      %24 = dma.hbm_to_vmem [thread:$0]  %s0, 768, %s19, [#allocation3], 128, 128, 8
    $region5: #{tpu_custom_call.1} parent=1 // pred_fallthru
      _
    // Predicated region
    $region6: #{tpu_custom_call.1} parent=1 // pred_check
      _
    $region7: #{tpu_custom_call.1} parent=1 // pred_check_branch
      %26 = sbr.rel (0) target = $region9
    $region8: #{tpu_custom_call.1} parent=1 // pred_region
      %s28 = ssub.s32 768, 768
      %29 = vsyncadd [#allocation6], %s28
      %s30 = sshll.u32 [#allocation5], 4
      %s31 = int_to_ptr.vmem [resolvable:$true] %s30
      %36 = dma.hbm_to_vmem [thread:$0]  %s1, 768, %s31, [#allocation6], 256, 256, 16
    $region9: #{tpu_custom_call.1} parent=1 // pred_fallthru
      _
    // Predicated region
    $region10: #{tpu_custom_call.1} parent=1 // pred_check
      _
    $region11: #{tpu_custom_call.1} parent=1 // pred_check_branch
      %38 = sbr.rel (0) target = $region13
    $region12: #{tpu_custom_call.1} parent=1 // pred_region
      _
    $region13: #{tpu_custom_call.1} parent=1 // pred_fallthru
      _
    // Predicated region
    $region14: #{tpu_custom_call.1} parent=1 // pred_check
      _
    $region15: #{tpu_custom_call.1} parent=1 // pred_check_branch
      %40 = sbr.rel (0) target = $region17
    $region16: #{tpu_custom_call.1} parent=1 // pred_region
      %s42 = ssub.s32 28672, 28672
      %43 = vsyncadd [#allocation6], %s42
      %s44 = sshll.u32 [#allocation7], 4
      %s45 = int_to_ptr.vmem [resolvable:$true] %s44
      %50 = dma.hbm_to_vmem [thread:$0]  %s3, 28672, %s45, [#allocation6], 448, 448, 28
    $region17: #{tpu_custom_call.1} parent=1 // pred_fallthru
      _
    // Predicated region
    $region18: #{tpu_custom_call.1} parent=1 // pred_check
      _
    $region19: #{tpu_custom_call.1} parent=1 // pred_check_branch
      %52 = sbr.rel (0) target = $region21
    $region20: #{tpu_custom_call.1} parent=1 // pred_region
      _
    $region21: #{tpu_custom_call.1} parent=1 // pred_fallthru
      _
    // Predicated region
    $region22: #{tpu_custom_call.1} parent=1 // pred_check
      _
    $region23: #{tpu_custom_call.1} parent=1 // pred_check_branch
      %54 = sbr.rel (0) target = $region25
    $region24: #{tpu_custom_call.1} parent=1 // pred_region
      %55 = dma.done [#allocation3], 768
    $region25: #{tpu_custom_call.1} parent=1 // pred_fallthru
      _
    // Predicated region
    $region26: #{tpu_custom_call.1} parent=1 // pred_check
      _
    $region27: #{tpu_custom_call.1} parent=1 // pred_check_branch
      %57 = sbr.rel (0) target = $region29
    $region28: #{tpu_custom_call.1} parent=1 // pred_region
      %58 = dma.done [#allocation6], 768
    $region29: #{tpu_custom_call.1} parent=1 // pred_fallthru
      _
    // Predicated region
    $region30: #{tpu_custom_call.1} parent=1 // pred_check
      _
    $region31: #{tpu_custom_call.1} parent=1 // pred_check_branch
      %60 = sbr.rel (0) target = $region33
    $region32: #{tpu_custom_call.1} parent=1 // pred_region
      %61 = dma.done [#allocation6], 28672
    $region33: #{tpu_custom_call.1} parent=1 // pred_fallthru
      _
    %v63 = vld [vmem:[#allocation2] sm:$0xff]
    %v64 = vld [vmem:[#allocation2 + $0x8] sm:$0xff]
    %s65 = scalar_lea.vmem [#allocation2], 16
    %v66 = vld [vmem:[%s65] sm:$0xff]
    %v67 = vld [vmem:[%s65 + $0x8] sm:$0xff]
    %s68 = scalar_lea.vmem [#allocation2], 32
    %v69 = vld [vmem:[%s68] sm:$0xff]
    %v70 = vld [vmem:[%s68 + $0x8] sm:$0xff]
    %v71 = vmul.f32 %v66, 1.442695
    %v72 = vpow.pop %v71
    %v73 = vmul.f32 %v67, 1.442695
    %v74 = vpow.pop %v73
    %v75 = vmul.f32 %v72, %v69
    %v76 = vmul.f32 %v74, %v70
    %v77 = vadd.f32 %v63, %v75
    %v78 = vadd.f32 %v64, %v76
    %v79 = vpack.c.bf16 %v78, %v77
    %v80 = vld [vmem:[#allocation5] sm:$0xff]
    %v81 = vld [vmem:[#allocation5 + $0x8] sm:$0xff]
    %v82 = vld [vmem:[#allocation5 + $0x10] sm:$0xff]
    %v83 = vld [vmem:[#allocation5 + $0x18] sm:$0xff]
    %v84 = vld [vmem:[#allocation5 + $0x20] sm:$0x33]
    %v85 = vld [vmem:[#allocation5 + $0x28] sm:$0x33]
    %v86 = vld [vmem:[%s2] sm:$0xf]
    %v88 = vlaneseq
    %v89 = vshrl.u32 %v88, 7
    %v90 = vsub.s32 0, %v89
    %v91 = vrot.slane %v86, %v90
    %v92 = vlaneseq
    %v93 = vshrl.u32 %v92, 7
    %v94 = vsub.s32 1, %v93
    %v95 = vrot.slane %v86, %v94
    %v96 = vlaneseq
    %v97 = vshrl.u32 %v96, 7
    %v98 = vsub.s32 2, %v97
    %v99 = vrot.slane %v86, %v98
    %v100 = vlaneseq
    %v101 = vshrl.u32 %v100, 7
    %v102 = vsub.s32 3, %v101
    %v103 = vrot.slane %v86, %v102
    %v114 = vunpack.c.l.b16 %v80
    %v115 = vunpack.c.h.b16 %v80
    %v116 = vunpack.c.l.b16 %v81
    %v117 = vunpack.c.h.b16 %v81
    %v118 = vunpack.c.l.b16 %v82
    %v119 = vunpack.c.h.b16 %v82
    %v120 = vunpack.c.l.b16 %v83
    %v121 = vunpack.c.h.b16 %v83
    %v122 = vunpack.c.l.b16 %v84
    %v123 = vunpack.c.h.b16 %v84
    %v124 = vunpack.c.l.b16 %v85
    %v125 = vunpack.c.h.b16 %v85
    %v126 = vpack.c.b16 %v118, %v114
    %v127 = vpack.c.b16 %v119, %v115
    %v128 = vpack.c.b16 %v120, %v116
    %v129 = vpack.c.b16 %v121, %v117
    %v130 = vpack.c.b16 %v122, %v122
    %v131 = vpack.c.b16 %v123, %v123
    %v132 = vpack.c.b16 %v124, %v124
    %v133 = vpack.c.b16 %v125, %v125
    %vm138 = vcmask 162816
    %v140 = vsel %vm138, %v79, 0
    %vm142 = vcmask 1041408
    %v144 = vsel %vm142, %v130, 0
    %v147 = vsel %vm142, %v131, 0
    %v150 = vsel %vm142, %v132, 0
    %v153 = vsel %vm142, %v133, 0
    %155 = vmatprep.subr.bf16.mxu0 %v127
    %156 = vmatpush1.bf16.msra.mxu0 %v126
    %157 = vmatprep.subr.bf16.mxu0 %v147
    %158 = vmatpush1.bf16.msra.mxu0 %v144
    %159 = vmatprep.subr.bf16.mxu0 0
    %160 = vmatpush1.bf16.msra.mxu0 0
    %161 = vmatprep.subr.bf16.mxu0 0
    %162 = vmatpush1.bf16.msra.mxu0 0
    %163 = vmatprep.subr.bf16.mxu0 0
    %164 = vmatpush1.bf16.msra.mxu0 0
    %165 = vmatprep.subr.bf16.mxu0 0
    %166 = vmatpush1.bf16.msra.mxu0 0
    %167 = vmatprep.subr.bf16.mxu0 0
    %168 = vmatpush1.bf16.msra.mxu0 0
    %169 = vmatprep.subr.bf16.mxu0 0
    %170 = vmatpush1.bf16.msra.mxu0 0
    %171 = vmatprep.subr.bf16.mxu0 0
    %172 = vmatpush1.bf16.msra.mxu0 0
    %173 = vmatprep.subr.bf16.mxu0 0
    %174 = vmatpush1.bf16.msra.mxu0 0
    %175 = vmatprep.subr.bf16.mxu0 0
    %176 = vmatpush1.bf16.msra.mxu0 0
    %177 = vmatprep.subr.bf16.mxu0 0
    %178 = vmatpush1.bf16.msra.mxu0 0
    %179 = vmatprep.subr.bf16.mxu0 0
    %180 = vmatpush1.bf16.msra.mxu0 0
    %181 = vmatprep.subr.bf16.mxu0 0
    %182 = vmatpush1.bf16.msra.mxu0 0
    %183 = vmatprep.subr.bf16.mxu0 0
    %184 = vmatpush1.bf16.msra.mxu0 0
    %185 = vmatprep.subr.bf16.mxu0 0
    %186 = vmatpush1.bf16.msra.mxu0 0
    %187 = vmatprep.mubr.bf16.mxu0 0
    %188 = vmatmul.mubr.bf16.gmra.mrb[0].mxu0 %v140
    %v189 = vpop.f32.mrb[0].mxu0
    %v190 = vadd.f32 %v91, %v189
    %v191 = vpop.f32.mrb[0].mxu0
    %v192 = vadd.f32 %v95, %v191
    %v193 = vpop.f32.mrb[0].mxu0
    %v194 = vadd.f32 %v91, %v193
    %v195 = vpop.f32.mrb[0].mxu0
    %v196 = vadd.f32 %v95, %v195
    %197 = vdwg.mxu0
    %198 = vmatprep.subr.bf16.mxu0 %v129
    %199 = vmatpush1.bf16.msra.mxu0 %v128
    %200 = vmatprep.subr.bf16.mxu0 %v153
    %201 = vmatpush1.bf16.msra.mxu0 %v150
    %202 = vmatprep.subr.bf16.mxu0 0
    %203 = vmatpush1.bf16.msra.mxu0 0
    %204 = vmatprep.subr.bf16.mxu0 0
    %205 = vmatpush1.bf16.msra.mxu0 0
    %206 = vmatprep.subr.bf16.mxu0 0
    %207 = vmatpush1.bf16.msra.mxu0 0
    %208 = vmatprep.subr.bf16.mxu0 0
    %209 = vmatpush1.bf16.msra.mxu0 0
    %210 = vmatprep.subr.bf16.mxu0 0
    %211 = vmatpush1.bf16.msra.mxu0 0
    %212 = vmatprep.subr.bf16.mxu0 0
    %213 = vmatpush1.bf16.msra.mxu0 0
    %214 = vmatprep.subr.bf16.mxu0 0
    %215 = vmatpush1.bf16.msra.mxu0 0
    %216 = vmatprep.subr.bf16.mxu0 0
    %217 = vmatpush1.bf16.msra.mxu0 0
    %218 = vmatprep.subr.bf16.mxu0 0
    %219 = vmatpush1.bf16.msra.mxu0 0
    %220 = vmatprep.subr.bf16.mxu0 0
    %221 = vmatpush1.bf16.msra.mxu0 0
    %222 = vmatprep.subr.bf16.mxu0 0
    %223 = vmatpush1.bf16.msra.mxu0 0
    %224 = vmatprep.subr.bf16.mxu0 0
    %225 = vmatpush1.bf16.msra.mxu0 0
    %226 = vmatprep.subr.bf16.mxu0 0
    %227 = vmatpush1.bf16.msra.mxu0 0
    %228 = vmatprep.subr.bf16.mxu0 0
    %229 = vmatpush1.bf16.msra.mxu0 0
    %230 = vmatprep.mubr.bf16.mxu0 0
    %231 = vmatmul.mubr.bf16.gmra.mrb[0].mxu0 %v140
    %v232 = vpop.f32.mrb[0].mxu0
    %v233 = vadd.f32 %v99, %v232
    %v234 = vpop.f32.mrb[0].mxu0
    %v235 = vadd.f32 %v103, %v234
    %v236 = vpop.f32.mrb[0].mxu0
    %v237 = vadd.f32 %v99, %v236
    %v238 = vpop.f32.mrb[0].mxu0
    %v239 = vadd.f32 %v103, %v238
    %240 = vdwg.mxu0
    %v241 = vmax.f32 %v190, 0.0
    %v242 = vmax.f32 %v192, 0.0
    %v243 = vmax.f32 %v233, 0.0
    %v244 = vmax.f32 %v235, 0.0
    %v245 = vmax.f32 %v194, 0.0
    %v246 = vmax.f32 %v196, 0.0
    %v247 = vmax.f32 %v237, 0.0
    %v248 = vmax.f32 %v239, 0.0
    %v249 = vpack.c.bf16 %v245, %v241
    %v250 = vpack.c.bf16 %v246, %v242
    %v251 = vpack.c.bf16 %v247, %v243
    %v252 = vpack.c.bf16 %v248, %v244
    %v253 = vld [vmem:[#allocation7] sm:$0xff]
    %v254 = vld [vmem:[#allocation7 + $0x8] sm:$0xff]
    %v255 = vld [vmem:[#allocation7 + $0x10] sm:$0xff]
    %v256 = vld [vmem:[#allocation7 + $0x18] sm:$0xf]
    %v257 = vld [vmem:[#allocation7 + $0x1c] sm:$0xff]
    %v258 = vld [vmem:[#allocation7 + $0x24] sm:$0xff]
    %v259 = vld [vmem:[#allocation7 + $0x2c] sm:$0xff]
    %v260 = vld [vmem:[#allocation7 + $0x34] sm:$0xf]
    %v261 = vld [vmem:[#allocation7 + $0x38] sm:$0xff]
    %v262 = vld [vmem:[#allocation7 + $0x40] sm:$0xff]
    %v263 = vld [vmem:[#allocation7 + $0x48] sm:$0xff]
    %v264 = vld [vmem:[#allocation7 + $0x50] sm:$0xf]
    %v265 = vld [vmem:[#allocation7 + $0x54] sm:$0xff]
    %v266 = vld [vmem:[#allocation7 + $0x5c] sm:$0xff]
    %v267 = vld [vmem:[#allocation7 + $0x64] sm:$0xff]
    %v268 = vld [vmem:[#allocation7 + $0x6c] sm:$0xf]
    %v269 = vld [vmem:[#allocation7 + $0x70] sm:$0xff]
    %v270 = vld [vmem:[#allocation7 + $0x78] sm:$0xff]
    %v271 = vld [vmem:[#allocation7 + $0x80] sm:$0xff]
    %v272 = vld [vmem:[#allocation7 + $0x88] sm:$0xf]
    %v273 = vld [vmem:[#allocation7 + $0x8c] sm:$0xff]
    %v274 = vld [vmem:[#allocation7 + $0x94] sm:$0xff]
    %v275 = vld [vmem:[#allocation7 + $0x9c] sm:$0xff]
    %v276 = vld [vmem:[#allocation7 + $0xa4] sm:$0xf]
    %v277 = vld [vmem:[#allocation7 + $0xa8] sm:$0xff]
    %v278 = vld [vmem:[#allocation7 + $0xb0] sm:$0xff]
    %v279 = vld [vmem:[#allocation7 + $0xb8] sm:$0xff]
    %v280 = vld [vmem:[#allocation7 + $0xc0] sm:$0xf]
    %v281 = vld [vmem:[#allocation7 + $0xc4] sm:$0xff]
    %v282 = vld [vmem:[#allocation7 + $0xcc] sm:$0xff]
    %v283 = vld [vmem:[#allocation7 + $0xd4] sm:$0xff]
    %v284 = vld [vmem:[#allocation7 + $0xdc] sm:$0xf]
    %v285 = vld [vmem:[#allocation7 + $0xe0] sm:$0xff]
    %v286 = vld [vmem:[#allocation7 + $0xe8] sm:$0xff]
    %v287 = vld [vmem:[#allocation7 + $0xf0] sm:$0xff]
    %v288 = vld [vmem:[#allocation7 + $0xf8] sm:$0xf]
    %v289 = vld [vmem:[#allocation7 + $0xfc] sm:$0xff]
    %v290 = vld [vmem:[#allocation7 + $0x104] sm:$0xff]
    %v291 = vld [vmem:[#allocation7 + $0x10c] sm:$0xff]
    %v292 = vld [vmem:[#allocation7 + $0x114] sm:$0xf]
    %v293 = vld [vmem:[#allocation7 + $0x118] sm:$0xff]
    %v294 = vld [vmem:[#allocation7 + $0x120] sm:$0xff]
    %v295 = vld [vmem:[#allocation7 + $0x128] sm:$0xff]
    %v296 = vld [vmem:[#allocation7 + $0x130] sm:$0xf]
    %v297 = vld [vmem:[#allocation7 + $0x134] sm:$0xff]
    %v298 = vld [vmem:[#allocation7 + $0x13c] sm:$0xff]
    %v299 = vld [vmem:[#allocation7 + $0x144] sm:$0xff]
    %v300 = vld [vmem:[#allocation7 + $0x14c] sm:$0xf]
    %v301 = vld [vmem:[#allocation7 + $0x150] sm:$0xff]
    %v302 = vld [vmem:[#allocation7 + $0x158] sm:$0xff]
    %v303 = vld [vmem:[#allocation7 + $0x160] sm:$0xff]
    %v304 = vld [vmem:[#allocation7 + $0x168] sm:$0xf]
    %v305 = vld [vmem:[#allocation7 + $0x16c] sm:$0xff]
    %v306 = vld [vmem:[#allocation7 + $0x174] sm:$0xff]
    %v307 = vld [vmem:[#allocation7 + $0x17c] sm:$0xff]
    %v308 = vld [vmem:[#allocation7 + $0x184] sm:$0xf]
    %v309 = vld [vmem:[#allocation7 + $0x188] sm:$0xff]
    %v310 = vld [vmem:[#allocation7 + $0x190] sm:$0xff]
    %v311 = vld [vmem:[#allocation7 + $0x198] sm:$0xff]
    %v312 = vld [vmem:[#allocation7 + $0x1a0] sm:$0xf]
    %v313 = vld [vmem:[#allocation7 + $0x1a4] sm:$0xff]
    %v314 = vld [vmem:[#allocation7 + $0x1ac] sm:$0xff]
    %v315 = vld [vmem:[#allocation7 + $0x1b4] sm:$0xff]
    %v316 = vld [vmem:[#allocation7 + $0x1bc] sm:$0xf]
    %v317 = vld [vmem:[#allocation7 + $0x1c0] sm:$0xff]
    %v318 = vld [vmem:[#allocation7 + $0x1c8] sm:$0xff]
    %v319 = vld [vmem:[#allocation7 + $0x1d0] sm:$0xff]
    %v320 = vld [vmem:[#allocation7 + $0x1d8] sm:$0xf]
    %v321 = vld [vmem:[#allocation7 + $0x1dc] sm:$0xff]
    %v322 = vld [vmem:[#allocation7 + $0x1e4] sm:$0xff]
    %v323 = vld [vmem:[#allocation7 + $0x1ec] sm:$0xff]
    %v324 = vld [vmem:[#allocation7 + $0x1f4] sm:$0xf]
    %v325 = vld [vmem:[#allocation7 + $0x1f8] sm:$0xff]
    %v326 = vld [vmem:[#allocation7 + $0x200] sm:$0xff]
    %v327 = vld [vmem:[#allocation7 + $0x208] sm:$0xff]
    %v328 = vld [vmem:[#allocation7 + $0x210] sm:$0xf]
    %v329 = vld [vmem:[#allocation7 + $0x214] sm:$0xff]
    %v330 = vld [vmem:[#allocation7 + $0x21c] sm:$0xff]
    %v331 = vld [vmem:[#allocation7 + $0x224] sm:$0xff]
    %v332 = vld [vmem:[#allocation7 + $0x22c] sm:$0xf]
    %v333 = vld [vmem:[#allocation7 + $0x230] sm:$0xff]
    %v334 = vld [vmem:[#allocation7 + $0x238] sm:$0xff]
    %v335 = vld [vmem:[#allocation7 + $0x240] sm:$0xff]
    %v336 = vld [vmem:[#allocation7 + $0x248] sm:$0xf]
    %v337 = vld [vmem:[#allocation7 + $0x24c] sm:$0xff]
    %v338 = vld [vmem:[#allocation7 + $0x254] sm:$0xff]
    %v339 = vld [vmem:[#allocation7 + $0x25c] sm:$0xff]
    %v340 = vld [vmem:[#allocation7 + $0x264] sm:$0xf]
    %v341 = vld [vmem:[#allocation7 + $0x268] sm:$0xff]
    %v342 = vld [vmem:[#allocation7 + $0x270] sm:$0xff]
    %v343 = vld [vmem:[#allocation7 + $0x278] sm:$0xff]
    %v344 = vld [vmem:[#allocation7 + $0x280] sm:$0xf]
    %v345 = vld [vmem:[#allocation7 + $0x284] sm:$0xff]
    %v346 = vld [vmem:[#allocation7 + $0x28c] sm:$0xff]
    %v347 = vld [vmem:[#allocation7 + $0x294] sm:$0xff]
    %v348 = vld [vmem:[#allocation7 + $0x29c] sm:$0xf]
    %v349 = vld [vmem:[#allocation7 + $0x2a0] sm:$0xff]
    %v350 = vld [vmem:[#allocation7 + $0x2a8] sm:$0xff]
    %v351 = vld [vmem:[#allocation7 + $0x2b0] sm:$0xff]
    %v352 = vld [vmem:[#allocation7 + $0x2b8] sm:$0xf]
    %v353 = vld [vmem:[#allocation7 + $0x2bc] sm:$0xff]
    %v354 = vld [vmem:[#allocation7 + $0x2c4] sm:$0xff]
    %v355 = vld [vmem:[#allocation7 + $0x2cc] sm:$0xff]
    %v356 = vld [vmem:[#allocation7 + $0x2d4] sm:$0xf]
    %v357 = vld [vmem:[#allocation7 + $0x2d8] sm:$0xff]
    %v358 = vld [vmem:[#allocation7 + $0x2e0] sm:$0xff]
    %v359 = vld [vmem:[#allocation7 + $0x2e8] sm:$0xff]
    %v360 = vld [vmem:[#allocation7 + $0x2f0] sm:$0xf]
    %v361 = vld [vmem:[#allocation7 + $0x2f4] sm:$0xff]
    %v362 = vld [vmem:[#allocation7 + $0x2fc] sm:$0xff]
    %v363 = vld [vmem:[#allocation7 + $0x304] sm:$0xff]
    %v364 = vld [vmem:[#allocation7 + $0x30c] sm:$0xf]
    %v365 = vld [vmem:[#allocation7 + $0x310] sm:$0xff]
    %v366 = vld [vmem:[#allocation7 + $0x318] sm:$0xff]
    %v367 = vld [vmem:[#allocation7 + $0x320] sm:$0xff]
    %v368 = vld [vmem:[#allocation7 + $0x328] sm:$0xf]
    %v369 = vld [vmem:[#allocation7 + $0x32c] sm:$0xff]
    %v370 = vld [vmem:[#allocation7 + $0x334] sm:$0xff]
    %v371 = vld [vmem:[#allocation7 + $0x33c] sm:$0xff]
    %v372 = vld [vmem:[#allocation7 + $0x344] sm:$0xf]
    %v373 = vld [vmem:[#allocation7 + $0x348] sm:$0xff]
    %v374 = vld [vmem:[#allocation7 + $0x350] sm:$0xff]
    %v375 = vld [vmem:[#allocation7 + $0x358] sm:$0xff]
    %v376 = vld [vmem:[#allocation7 + $0x360] sm:$0xf]
    %v377 = vld [vmem:[#allocation7 + $0x364] sm:$0xff]
    %v378 = vld [vmem:[#allocation7 + $0x36c] sm:$0xff]
    %v379 = vld [vmem:[#allocation7 + $0x374] sm:$0xff]
    %v380 = vld [vmem:[#allocation7 + $0x37c] sm:$0xf]
    %v381 = vld [vmem:[#allocation7 + $0x380] sm:$0xff]
    %v382 = vld [vmem:[#allocation7 + $0x388] sm:$0xff]
    %v383 = vld [vmem:[#allocation7 + $0x390] sm:$0xff]
    %v384 = vld [vmem:[#allocation7 + $0x398] sm:$0xf]
    %v385 = vld [vmem:[#allocation7 + $0x39c] sm:$0xff]
    %v386 = vld [vmem:[#allocation7 + $0x3a4] sm:$0xff]
    %v387 = vld [vmem:[#allocation7 + $0x3ac] sm:$0xff]
    %v388 = vld [vmem:[#allocation7 + $0x3b4] sm:$0xf]
    %v389 = vld [vmem:[#allocation7 + $0x3b8] sm:$0xff]
    %v390 = vld [vmem:[#allocation7 + $0x3c0] sm:$0xff]
    %v391 = vld [vmem:[#allocation7 + $0x3c8] sm:$0xff]
    %v392 = vld [vmem:[#allocation7 + $0x3d0] sm:$0xf]
    %v393 = vld [vmem:[#allocation7 + $0x3d4] sm:$0xff]
    %v394 = vld [vmem:[#allocation7 + $0x3dc] sm:$0xff]
    %v395 = vld [vmem:[#allocation7 + $0x3e4] sm:$0xff]
    %v396 = vld [vmem:[#allocation7 + $0x3ec] sm:$0xf]
    %v397 = vld [vmem:[#allocation7 + $0x3f0] sm:$0xff]
    %v398 = vld [vmem:[#allocation7 + $0x3f8] sm:$0xff]
    %v399 = vld [vmem:[#allocation7 + $0x400] sm:$0xff]
    %v400 = vld [vmem:[#allocation7 + $0x408] sm:$0xf]
    %v401 = vld [vmem:[#allocation7 + $0x40c] sm:$0xff]
    %v402 = vld [vmem:[#allocation7 + $0x414] sm:$0xff]
    %v403 = vld [vmem:[#allocation7 + $0x41c] sm:$0xff]
    %v404 = vld [vmem:[#allocation7 + $0x424] sm:$0xf]
    %v405 = vld [vmem:[#allocation7 + $0x428] sm:$0xff]
    %v406 = vld [vmem:[#allocation7 + $0x430] sm:$0xff]
    %v407 = vld [vmem:[#allocation7 + $0x438] sm:$0xff]
    %v408 = vld [vmem:[#allocation7 + $0x440] sm:$0xf]
    %v409 = vld [vmem:[#allocation7 + $0x444] sm:$0xff]
    %v410 = vld [vmem:[#allocation7 + $0x44c] sm:$0xff]
    %v411 = vld [vmem:[#allocation7 + $0x454] sm:$0xff]
    %v412 = vld [vmem:[#allocation7 + $0x45c] sm:$0xf]
    %v413 = vld [vmem:[#allocation7 + $0x460] sm:$0xff]
    %v414 = vld [vmem:[#allocation7 + $0x468] sm:$0xff]
    %v415 = vld [vmem:[#allocation7 + $0x470] sm:$0xff]
    %v416 = vld [vmem:[#allocation7 + $0x478] sm:$0xf]
    %v417 = vld [vmem:[#allocation7 + $0x47c] sm:$0xff]
    %v418 = vld [vmem:[#allocation7 + $0x484] sm:$0xff]
    %v419 = vld [vmem:[#allocation7 + $0x48c] sm:$0xff]
    %v420 = vld [vmem:[#allocation7 + $0x494] sm:$0xf]
    %v421 = vld [vmem:[#allocation7 + $0x498] sm:$0xff]
    %v422 = vld [vmem:[#allocation7 + $0x4a0] sm:$0xff]
    %v423 = vld [vmem:[#allocation7 + $0x4a8] sm:$0xff]
    %v424 = vld [vmem:[#allocation7 + $0x4b0] sm:$0xf]
    %v425 = vld [vmem:[#allocation7 + $0x4b4] sm:$0xff]
    %v426 = vld [vmem:[#allocation7 + $0x4bc] sm:$0xff]
    %v427 = vld [vmem:[#allocation7 + $0x4c4] sm:$0xff]
    %v428 = vld [vmem:[#allocation7 + $0x4cc] sm:$0xf]
    %v429 = vld [vmem:[#allocation7 + $0x4d0] sm:$0xff]
    %v430 = vld [vmem:[#allocation7 + $0x4d8] sm:$0xff]
    %v431 = vld [vmem:[#allocation7 + $0x4e0] sm:$0xff]
    %v432 = vld [vmem:[#allocation7 + $0x4e8] sm:$0xf]
    %v433 = vld [vmem:[#allocation7 + $0x4ec] sm:$0xff]
    %v434 = vld [vmem:[#allocation7 + $0x4f4] sm:$0xff]
    %v435 = vld [vmem:[#allocation7 + $0x4fc] sm:$0xff]
    %v436 = vld [vmem:[#allocation7 + $0x504] sm:$0xf]
    %v437 = vld [vmem:[#allocation7 + $0x508] sm:$0xff]
    %v438 = vld [vmem:[#allocation7 + $0x510] sm:$0xff]
    %v439 = vld [vmem:[#allocation7 + $0x518] sm:$0xff]
    %v440 = vld [vmem:[#allocation7 + $0x520] sm:$0xf]
    %v441 = vld [vmem:[#allocation7 + $0x524] sm:$0xff]
    %v442 = vld [vmem:[#allocation7 + $0x52c] sm:$0xff]
    %v443 = vld [vmem:[#allocation7 + $0x534] sm:$0xff]
    %v444 = vld [vmem:[#allocation7 + $0x53c] sm:$0xf]
    %v445 = vld [vmem:[#allocation7 + $0x540] sm:$0xff]
    %v446 = vld [vmem:[#allocation7 + $0x548] sm:$0xff]
    %v447 = vld [vmem:[#allocation7 + $0x550] sm:$0xff]
    %v448 = vld [vmem:[#allocation7 + $0x558] sm:$0xf]
    %v449 = vld [vmem:[#allocation7 + $0x55c] sm:$0xff]
    %v450 = vld [vmem:[#allocation7 + $0x564] sm:$0xff]
    %v451 = vld [vmem:[#allocation7 + $0x56c] sm:$0xff]
    %v452 = vld [vmem:[#allocation7 + $0x574] sm:$0xf]
    %v453 = vld [vmem:[#allocation7 + $0x578] sm:$0xff]
    %v454 = vld [vmem:[#allocation7 + $0x580] sm:$0xff]
    %v455 = vld [vmem:[#allocation7 + $0x588] sm:$0xff]
    %v456 = vld [vmem:[#allocation7 + $0x590] sm:$0xf]
    %v457 = vld [vmem:[#allocation7 + $0x594] sm:$0xff]
    %v458 = vld [vmem:[#allocation7 + $0x59c] sm:$0xff]
    %v459 = vld [vmem:[#allocation7 + $0x5a4] sm:$0xff]
    %v460 = vld [vmem:[#allocation7 + $0x5ac] sm:$0xf]
    %v461 = vld [vmem:[#allocation7 + $0x5b0] sm:$0xff]
    %v462 = vld [vmem:[#allocation7 + $0x5b8] sm:$0xff]
    %v463 = vld [vmem:[#allocation7 + $0x5c0] sm:$0xff]
    %v464 = vld [vmem:[#allocation7 + $0x5c8] sm:$0xf]
    %v465 = vld [vmem:[#allocation7 + $0x5cc] sm:$0xff]
    %v466 = vld [vmem:[#allocation7 + $0x5d4] sm:$0xff]
    %v467 = vld [vmem:[#allocation7 + $0x5dc] sm:$0xff]
    %v468 = vld [vmem:[#allocation7 + $0x5e4] sm:$0xf]
    %v469 = vld [vmem:[#allocation7 + $0x5e8] sm:$0xff]
    %v470 = vld [vmem:[#allocation7 + $0x5f0] sm:$0xff]
    %v471 = vld [vmem:[#allocation7 + $0x5f8] sm:$0xff]
    %v472 = vld [vmem:[#allocation7 + $0x600] sm:$0xf]
    %v473 = vld [vmem:[#allocation7 + $0x604] sm:$0xff]
    %v474 = vld [vmem:[#allocation7 + $0x60c] sm:$0xff]
    %v475 = vld [vmem:[#allocation7 + $0x614] sm:$0xff]
    %v476 = vld [vmem:[#allocation7 + $0x61c] sm:$0xf]
    %v477 = vld [vmem:[#allocation7 + $0x620] sm:$0xff]
    %v478 = vld [vmem:[#allocation7 + $0x628] sm:$0xff]
    %v479 = vld [vmem:[#allocation7 + $0x630] sm:$0xff]
    %v480 = vld [vmem:[#allocation7 + $0x638] sm:$0xf]
    %v481 = vld [vmem:[#allocation7 + $0x63c] sm:$0xff]
    %v482 = vld [vmem:[#allocation7 + $0x644] sm:$0xff]
    %v483 = vld [vmem:[#allocation7 + $0x64c] sm:$0xff]
    %v484 = vld [vmem:[#allocation7 + $0x654] sm:$0xf]
    %v485 = vld [vmem:[#allocation7 + $0x658] sm:$0xff]
    %v486 = vld [vmem:[#allocation7 + $0x660] sm:$0xff]
    %v487 = vld [vmem:[#allocation7 + $0x668] sm:$0xff]
    %v488 = vld [vmem:[#allocation7 + $0x670] sm:$0xf]
    %v489 = vld [vmem:[#allocation7 + $0x674] sm:$0xff]
    %v490 = vld [vmem:[#allocation7 + $0x67c] sm:$0xff]
    %v491 = vld [vmem:[#allocation7 + $0x684] sm:$0xff]
    %v492 = vld [vmem:[#allocation7 + $0x68c] sm:$0xf]
    %v493 = vld [vmem:[#allocation7 + $0x690] sm:$0xff]
    %v494 = vld [vmem:[#allocation7 + $0x698] sm:$0xff]
    %v495 = vld [vmem:[#allocation7 + $0x6a0] sm:$0xff]
    %v496 = vld [vmem:[#allocation7 + $0x6a8] sm:$0xf]
    %v497 = vld [vmem:[#allocation7 + $0x6ac] sm:$0xff]
    %v498 = vld [vmem:[#allocation7 + $0x6b4] sm:$0xff]
    %v499 = vld [vmem:[#allocation7 + $0x6bc] sm:$0xff]
    %v500 = vld [vmem:[#allocation7 + $0x6c4] sm:$0xf]
    %v501 = vld [vmem:[#allocation7 + $0x6c8] sm:$0xff]
    %v502 = vld [vmem:[#allocation7 + $0x6d0] sm:$0xff]
    %v503 = vld [vmem:[#allocation7 + $0x6d8] sm:$0xff]
    %v504 = vld [vmem:[#allocation7 + $0x6e0] sm:$0xf]
    %v505 = vld [vmem:[#allocation7 + $0x6e4] sm:$0xff]
    %v506 = vld [vmem:[#allocation7 + $0x6ec] sm:$0xff]
    %v507 = vld [vmem:[#allocation7 + $0x6f4] sm:$0xff]
    %v508 = vld [vmem:[#allocation7 + $0x6fc] sm:$0xf]
    %v509 = vld [vmem:[%s4] sm:$0xff]
    %v511 = vlaneseq
    %v512 = vshrl.u32 %v511, 7
    %v513 = vsub.s32 0, %v512
    %v514 = vrot.slane %v509, %v513
    %v515 = vlaneseq
    %v516 = vshrl.u32 %v515, 7
    %v517 = vsub.s32 1, %v516
    %v518 = vrot.slane %v509, %v517
    %v519 = vlaneseq
    %v520 = vshrl.u32 %v519, 7
    %v521 = vsub.s32 2, %v520
    %v522 = vrot.slane %v509, %v521
    %v523 = vlaneseq
    %v524 = vshrl.u32 %v523, 7
    %v525 = vsub.s32 3, %v524
    %v526 = vrot.slane %v509, %v525
    %v527 = vlaneseq
    %v528 = vshrl.u32 %v527, 7
    %v529 = vsub.s32 4, %v528
    %v530 = vrot.slane %v509, %v529
    %v531 = vlaneseq
    %v532 = vshrl.u32 %v531, 7
    %v533 = vsub.s32 5, %v532
    %v534 = vrot.slane %v509, %v533
    %v535 = vlaneseq
    %v536 = vshrl.u32 %v535, 7
    %v537 = vsub.s32 6, %v536
    %v538 = vrot.slane %v509, %v537
    %v802 = vunpack.c.l.b16 %v253
    %v803 = vunpack.c.h.b16 %v253
    %v804 = vunpack.c.l.b16 %v254
    %v805 = vunpack.c.h.b16 %v254
    %v806 = vunpack.c.l.b16 %v255
    %v807 = vunpack.c.h.b16 %v255
    %v808 = vunpack.c.l.b16 %v256
    %v809 = vunpack.c.l.b16 %v257
    %v810 = vunpack.c.h.b16 %v257
    %v811 = vunpack.c.l.b16 %v258
    %v812 = vunpack.c.h.b16 %v258
    %v813 = vunpack.c.l.b16 %v259
    %v814 = vunpack.c.h.b16 %v259
    %v815 = vunpack.c.l.b16 %v260
    %v816 = vunpack.c.l.b16 %v261
    %v817 = vunpack.c.h.b16 %v261
    %v818 = vunpack.c.l.b16 %v262
    %v819 = vunpack.c.h.b16 %v262
    %v820 = vunpack.c.l.b16 %v263
    %v821 = vunpack.c.h.b16 %v263
    %v822 = vunpack.c.l.b16 %v264
    %v823 = vunpack.c.l.b16 %v265
    %v824 = vunpack.c.h.b16 %v265
    %v825 = vunpack.c.l.b16 %v266
    %v826 = vunpack.c.h.b16 %v266
    %v827 = vunpack.c.l.b16 %v267
    %v828 = vunpack.c.h.b16 %v267
    %v829 = vunpack.c.l.b16 %v268
    %v830 = vunpack.c.l.b16 %v269
    %v831 = vunpack.c.h.b16 %v269
    %v832 = vunpack.c.l.b16 %v270
    %v833 = vunpack.c.h.b16 %v270
    %v834 = vunpack.c.l.b16 %v271
    %v835 = vunpack.c.h.b16 %v271
    %v836 = vunpack.c.l.b16 %v272
    %v837 = vunpack.c.l.b16 %v273
    %v838 = vunpack.c.h.b16 %v273
    %v839 = vunpack.c.l.b16 %v274
    %v840 = vunpack.c.h.b16 %v274
    %v841 = vunpack.c.l.b16 %v275
    %v842 = vunpack.c.h.b16 %v275
    %v843 = vunpack.c.l.b16 %v276
    %v844 = vunpack.c.l.b16 %v277
    %v845 = vunpack.c.h.b16 %v277
    %v846 = vunpack.c.l.b16 %v278
    %v847 = vunpack.c.h.b16 %v278
    %v848 = vunpack.c.l.b16 %v279
    %v849 = vunpack.c.h.b16 %v279
    %v850 = vunpack.c.l.b16 %v280
    %v851 = vunpack.c.l.b16 %v281
    %v852 = vunpack.c.h.b16 %v281
    %v853 = vunpack.c.l.b16 %v282
    %v854 = vunpack.c.h.b16 %v282
    %v855 = vunpack.c.l.b16 %v283
    %v856 = vunpack.c.h.b16 %v283
    %v857 = vunpack.c.l.b16 %v284
    %v858 = vunpack.c.l.b16 %v285
    %v859 = vunpack.c.h.b16 %v285
    %v860 = vunpack.c.l.b16 %v286
    %v861 = vunpack.c.h.b16 %v286
    %v862 = vunpack.c.l.b16 %v287
    %v863 = vunpack.c.h.b16 %v287
    %v864 = vunpack.c.l.b16 %v288
    %v865 = vunpack.c.l.b16 %v289
    %v866 = vunpack.c.h.b16 %v289
    %v867 = vunpack.c.l.b16 %v290
    %v868 = vunpack.c.h.b16 %v290
    %v869 = vunpack.c.l.b16 %v291
    %v870 = vunpack.c.h.b16 %v291
    %v871 = vunpack.c.l.b16 %v292
    %v872 = vunpack.c.l.b16 %v293
    %v873 = vunpack.c.h.b16 %v293
    %v874 = vunpack.c.l.b16 %v294
    %v875 = vunpack.c.h.b16 %v294
    %v876 = vunpack.c.l.b16 %v295
    %v877 = vunpack.c.h.b16 %v295
    %v878 = vunpack.c.l.b16 %v296
    %v879 = vunpack.c.l.b16 %v297
    %v880 = vunpack.c.h.b16 %v297
    %v881 = vunpack.c.l.b16 %v298
    %v882 = vunpack.c.h.b16 %v298
    %v883 = vunpack.c.l.b16 %v299
    %v884 = vunpack.c.h.b16 %v299
    %v885 = vunpack.c.l.b16 %v300
    %v886 = vunpack.c.l.b16 %v301
    %v887 = vunpack.c.h.b16 %v301
    %v888 = vunpack.c.l.b16 %v302
    %v889 = vunpack.c.h.b16 %v302
    %v890 = vunpack.c.l.b16 %v303
    %v891 = vunpack.c.h.b16 %v303
    %v892 = vunpack.c.l.b16 %v304
    %v893 = vunpack.c.l.b16 %v305
    %v894 = vunpack.c.h.b16 %v305
    %v895 = vunpack.c.l.b16 %v306
    %v896 = vunpack.c.h.b16 %v306
    %v897 = vunpack.c.l.b16 %v307
    %v898 = vunpack.c.h.b16 %v307
    %v899 = vunpack.c.l.b16 %v308
    %v900 = vunpack.c.l.b16 %v309
    %v901 = vunpack.c.h.b16 %v309
    %v902 = vunpack.c.l.b16 %v310
    %v903 = vunpack.c.h.b16 %v310
    %v904 = vunpack.c.l.b16 %v311
    %v905 = vunpack.c.h.b16 %v311
    %v906 = vunpack.c.l.b16 %v312
    %v907 = vunpack.c.l.b16 %v313
    %v908 = vunpack.c.h.b16 %v313
    %v909 = vunpack.c.l.b16 %v314
    %v910 = vunpack.c.h.b16 %v314
    %v911 = vunpack.c.l.b16 %v315
    %v912 = vunpack.c.h.b16 %v315
    %v913 = vunpack.c.l.b16 %v316
    %v914 = vunpack.c.l.b16 %v317
    %v915 = vunpack.c.h.b16 %v317
    %v916 = vunpack.c.l.b16 %v318
    %v917 = vunpack.c.h.b16 %v318
    %v918 = vunpack.c.l.b16 %v319
    %v919 = vunpack.c.h.b16 %v319
    %v920 = vunpack.c.l.b16 %v320
    %v921 = vunpack.c.l.b16 %v321
    %v922 = vunpack.c.h.b16 %v321
    %v923 = vunpack.c.l.b16 %v322
    %v924 = vunpack.c.h.b16 %v322
    %v925 = vunpack.c.l.b16 %v323
    %v926 = vunpack.c.h.b16 %v323
    %v927 = vunpack.c.l.b16 %v324
    %v928 = vunpack.c.l.b16 %v325
    %v929 = vunpack.c.h.b16 %v325
    %v930 = vunpack.c.l.b16 %v326
    %v931 = vunpack.c.h.b16 %v326
    %v932 = vunpack.c.l.b16 %v327
    %v933 = vunpack.c.h.b16 %v327
    %v934 = vunpack.c.l.b16 %v328
    %v935 = vunpack.c.l.b16 %v329
    %v936 = vunpack.c.h.b16 %v329
    %v937 = vunpack.c.l.b16 %v330
    %v938 = vunpack.c.h.b16 %v330
    %v939 = vunpack.c.l.b16 %v331
    %v940 = vunpack.c.h.b16 %v331
    %v941 = vunpack.c.l.b16 %v332
    %v942 = vunpack.c.l.b16 %v333
    %v943 = vunpack.c.h.b16 %v333
    %v944 = vunpack.c.l.b16 %v334
    %v945 = vunpack.c.h.b16 %v334
    %v946 = vunpack.c.l.b16 %v335
    %v947 = vunpack.c.h.b16 %v335
    %v948 = vunpack.c.l.b16 %v336
    %v949 = vunpack.c.l.b16 %v337
    %v950 = vunpack.c.h.b16 %v337
    %v951 = vunpack.c.l.b16 %v338
    %v952 = vunpack.c.h.b16 %v338
    %v953 = vunpack.c.l.b16 %v339
    %v954 = vunpack.c.h.b16 %v339
    %v955 = vunpack.c.l.b16 %v340
    %v956 = vunpack.c.l.b16 %v341
    %v957 = vunpack.c.h.b16 %v341
    %v958 = vunpack.c.l.b16 %v342
    %v959 = vunpack.c.h.b16 %v342
    %v960 = vunpack.c.l.b16 %v343
    %v961 = vunpack.c.h.b16 %v343
    %v962 = vunpack.c.l.b16 %v344
    %v963 = vunpack.c.l.b16 %v345
    %v964 = vunpack.c.h.b16 %v345
    %v965 = vunpack.c.l.b16 %v346
    %v966 = vunpack.c.h.b16 %v346
    %v967 = vunpack.c.l.b16 %v347
    %v968 = vunpack.c.h.b16 %v347
    %v969 = vunpack.c.l.b16 %v348
    %v970 = vunpack.c.l.b16 %v349
    %v971 = vunpack.c.h.b16 %v349
    %v972 = vunpack.c.l.b16 %v350
    %v973 = vunpack.c.h.b16 %v350
    %v974 = vunpack.c.l.b16 %v351
    %v975 = vunpack.c.h.b16 %v351
    %v976 = vunpack.c.l.b16 %v352
    %v977 = vunpack.c.l.b16 %v353
    %v978 = vunpack.c.h.b16 %v353
    %v979 = vunpack.c.l.b16 %v354
    %v980 = vunpack.c.h.b16 %v354
    %v981 = vunpack.c.l.b16 %v355
    %v982 = vunpack.c.h.b16 %v355
    %v983 = vunpack.c.l.b16 %v356
    %v984 = vunpack.c.l.b16 %v357
    %v985 = vunpack.c.h.b16 %v357
    %v986 = vunpack.c.l.b16 %v358
    %v987 = vunpack.c.h.b16 %v358
    %v988 = vunpack.c.l.b16 %v359
    %v989 = vunpack.c.h.b16 %v359
    %v990 = vunpack.c.l.b16 %v360
    %v991 = vunpack.c.l.b16 %v361
    %v992 = vunpack.c.h.b16 %v361
    %v993 = vunpack.c.l.b16 %v362
    %v994 = vunpack.c.h.b16 %v362
    %v995 = vunpack.c.l.b16 %v363
    %v996 = vunpack.c.h.b16 %v363
    %v997 = vunpack.c.l.b16 %v364
    %v998 = vunpack.c.l.b16 %v365
    %v999 = vunpack.c.h.b16 %v365
    %v1000 = vunpack.c.l.b16 %v366
    %v1001 = vunpack.c.h.b16 %v366
    %v1002 = vunpack.c.l.b16 %v367
    %v1003 = vunpack.c.h.b16 %v367
    %v1004 = vunpack.c.l.b16 %v368
    %v1005 = vunpack.c.l.b16 %v369
    %v1006 = vunpack.c.h.b16 %v369
    %v1007 = vunpack.c.l.b16 %v370
    %v1008 = vunpack.c.h.b16 %v370
    %v1009 = vunpack.c.l.b16 %v371
    %v1010 = vunpack.c.h.b16 %v371
    %v1011 = vunpack.c.l.b16 %v372
    %v1012 = vunpack.c.l.b16 %v373
    %v1013 = vunpack.c.h.b16 %v373
    %v1014 = vunpack.c.l.b16 %v374
    %v1015 = vunpack.c.h.b16 %v374
    %v1016 = vunpack.c.l.b16 %v375
    %v1017 = vunpack.c.h.b16 %v375
    %v1018 = vunpack.c.l.b16 %v376
    %v1019 = vunpack.c.l.b16 %v377
    %v1020 = vunpack.c.h.b16 %v377
    %v1021 = vunpack.c.l.b16 %v378
    %v1022 = vunpack.c.h.b16 %v378
    %v1023 = vunpack.c.l.b16 %v379
    %v1024 = vunpack.c.h.b16 %v379
    %v1025 = vunpack.c.l.b16 %v380
    %v1026 = vunpack.c.l.b16 %v381
    %v1027 = vunpack.c.h.b16 %v381
    %v1028 = vunpack.c.l.b16 %v382
    %v1029 = vunpack.c.h.b16 %v382
    %v1030 = vunpack.c.l.b16 %v383
    %v1031 = vunpack.c.h.b16 %v383
    %v1032 = vunpack.c.l.b16 %v384
    %v1033 = vunpack.c.l.b16 %v385
    %v1034 = vunpack.c.h.b16 %v385
    %v1035 = vunpack.c.l.b16 %v386
    %v1036 = vunpack.c.h.b16 %v386
    %v1037 = vunpack.c.l.b16 %v387
    %v1038 = vunpack.c.h.b16 %v387
    %v1039 = vunpack.c.l.b16 %v388
    %v1040 = vunpack.c.l.b16 %v389
    %v1041 = vunpack.c.h.b16 %v389
    %v1042 = vunpack.c.l.b16 %v390
    %v1043 = vunpack.c.h.b16 %v390
    %v1044 = vunpack.c.l.b16 %v391
    %v1045 = vunpack.c.h.b16 %v391
    %v1046 = vunpack.c.l.b16 %v392
    %v1047 = vunpack.c.l.b16 %v393
    %v1048 = vunpack.c.h.b16 %v393
    %v1049 = vunpack.c.l.b16 %v394
    %v1050 = vunpack.c.h.b16 %v394
    %v1051 = vunpack.c.l.b16 %v395
    %v1052 = vunpack.c.h.b16 %v395
    %v1053 = vunpack.c.l.b16 %v396
    %v1054 = vunpack.c.l.b16 %v397
    %v1055 = vunpack.c.h.b16 %v397
    %v1056 = vunpack.c.l.b16 %v398
    %v1057 = vunpack.c.h.b16 %v398
    %v1058 = vunpack.c.l.b16 %v399
    %v1059 = vunpack.c.h.b16 %v399
    %v1060 = vunpack.c.l.b16 %v400
    %v1061 = vunpack.c.l.b16 %v401
    %v1062 = vunpack.c.h.b16 %v401
    %v1063 = vunpack.c.l.b16 %v402
    %v1064 = vunpack.c.h.b16 %v402
    %v1065 = vunpack.c.l.b16 %v403
    %v1066 = vunpack.c.h.b16 %v403
    %v1067 = vunpack.c.l.b16 %v404
    %v1068 = vunpack.c.l.b16 %v405
    %v1069 = vunpack.c.h.b16 %v405
    %v1070 = vunpack.c.l.b16 %v406
    %v1071 = vunpack.c.h.b16 %v406
    %v1072 = vunpack.c.l.b16 %v407
    %v1073 = vunpack.c.h.b16 %v407
    %v1074 = vunpack.c.l.b16 %v408
    %v1075 = vunpack.c.l.b16 %v409
    %v1076 = vunpack.c.h.b16 %v409
    %v1077 = vunpack.c.l.b16 %v410
    %v1078 = vunpack.c.h.b16 %v410
    %v1079 = vunpack.c.l.b16 %v411
    %v1080 = vunpack.c.h.b16 %v411
    %v1081 = vunpack.c.l.b16 %v412
    %v1082 = vunpack.c.l.b16 %v413
    %v1083 = vunpack.c.h.b16 %v413
    %v1084 = vunpack.c.l.b16 %v414
    %v1085 = vunpack.c.h.b16 %v414
    %v1086 = vunpack.c.l.b16 %v415
    %v1087 = vunpack.c.h.b16 %v415
    %v1088 = vunpack.c.l.b16 %v416
    %v1089 = vunpack.c.l.b16 %v417
    %v1090 = vunpack.c.h.b16 %v417
    %v1091 = vunpack.c.l.b16 %v418
    %v1092 = vunpack.c.h.b16 %v418
    %v1093 = vunpack.c.l.b16 %v419
    %v1094 = vunpack.c.h.b16 %v419
    %v1095 = vunpack.c.l.b16 %v420
    %v1096 = vunpack.c.l.b16 %v421
    %v1097 = vunpack.c.h.b16 %v421
    %v1098 = vunpack.c.l.b16 %v422
    %v1099 = vunpack.c.h.b16 %v422
    %v1100 = vunpack.c.l.b16 %v423
    %v1101 = vunpack.c.h.b16 %v423
    %v1102 = vunpack.c.l.b16 %v424
    %v1103 = vunpack.c.l.b16 %v425
    %v1104 = vunpack.c.h.b16 %v425
    %v1105 = vunpack.c.l.b16 %v426
    %v1106 = vunpack.c.h.b16 %v426
    %v1107 = vunpack.c.l.b16 %v427
    %v1108 = vunpack.c.h.b16 %v427
    %v1109 = vunpack.c.l.b16 %v428
    %v1110 = vunpack.c.l.b16 %v429
    %v1111 = vunpack.c.h.b16 %v429
    %v1112 = vunpack.c.l.b16 %v430
    %v1113 = vunpack.c.h.b16 %v430
    %v1114 = vunpack.c.l.b16 %v431
    %v1115 = vunpack.c.h.b16 %v431
    %v1116 = vunpack.c.l.b16 %v432
    %v1117 = vunpack.c.l.b16 %v433
    %v1118 = vunpack.c.h.b16 %v433
    %v1119 = vunpack.c.l.b16 %v434
    %v1120 = vunpack.c.h.b16 %v434
    %v1121 = vunpack.c.l.b16 %v435
    %v1122 = vunpack.c.h.b16 %v435
    %v1123 = vunpack.c.l.b16 %v436
    %v1124 = vunpack.c.l.b16 %v437
    %v1125 = vunpack.c.h.b16 %v437
    %v1126 = vunpack.c.l.b16 %v438
    %v1127 = vunpack.c.h.b16 %v438
    %v1128 = vunpack.c.l.b16 %v439
    %v1129 = vunpack.c.h.b16 %v439
    %v1130 = vunpack.c.l.b16 %v440
    %v1131 = vunpack.c.l.b16 %v441
    %v1132 = vunpack.c.h.b16 %v441
    %v1133 = vunpack.c.l.b16 %v442
    %v1134 = vunpack.c.h.b16 %v442
    %v1135 = vunpack.c.l.b16 %v443
    %v1136 = vunpack.c.h.b16 %v443
    %v1137 = vunpack.c.l.b16 %v444
    %v1138 = vunpack.c.l.b16 %v445
    %v1139 = vunpack.c.h.b16 %v445
    %v1140 = vunpack.c.l.b16 %v446
    %v1141 = vunpack.c.h.b16 %v446
    %v1142 = vunpack.c.l.b16 %v447
    %v1143 = vunpack.c.h.b16 %v447
    %v1144 = vunpack.c.l.b16 %v448
    %v1145 = vunpack.c.l.b16 %v449
    %v1146 = vunpack.c.h.b16 %v449
    %v1147 = vunpack.c.l.b16 %v450
    %v1148 = vunpack.c.h.b16 %v450
    %v1149 = vunpack.c.l.b16 %v451
    %v1150 = vunpack.c.h.b16 %v451
    %v1151 = vunpack.c.l.b16 %v452
    %v1152 = vunpack.c.l.b16 %v453
    %v1153 = vunpack.c.h.b16 %v453
    %v1154 = vunpack.c.l.b16 %v454
    %v1155 = vunpack.c.h.b16 %v454
    %v1156 = vunpack.c.l.b16 %v455
    %v1157 = vunpack.c.h.b16 %v455
    %v1158 = vunpack.c.l.b16 %v456
    %v1159 = vunpack.c.l.b16 %v457
    %v1160 = vunpack.c.h.b16 %v457
    %v1161 = vunpack.c.l.b16 %v458
    %v1162 = vunpack.c.h.b16 %v458
    %v1163 = vunpack.c.l.b16 %v459
    %v1164 = vunpack.c.h.b16 %v459
    %v1165 = vunpack.c.l.b16 %v460
    %v1166 = vunpack.c.l.b16 %v461
    %v1167 = vunpack.c.h.b16 %v461
    %v1168 = vunpack.c.l.b16 %v462
    %v1169 = vunpack.c.h.b16 %v462
    %v1170 = vunpack.c.l.b16 %v463
    %v1171 = vunpack.c.h.b16 %v463
    %v1172 = vunpack.c.l.b16 %v464
    %v1173 = vunpack.c.l.b16 %v465
    %v1174 = vunpack.c.h.b16 %v465
    %v1175 = vunpack.c.l.b16 %v466
    %v1176 = vunpack.c.h.b16 %v466
    %v1177 = vunpack.c.l.b16 %v467
    %v1178 = vunpack.c.h.b16 %v467
    %v1179 = vunpack.c.l.b16 %v468
    %v1180 = vunpack.c.l.b16 %v469
    %v1181 = vunpack.c.h.b16 %v469
    %v1182 = vunpack.c.l.b16 %v470
    %v1183 = vunpack.c.h.b16 %v470
    %v1184 = vunpack.c.l.b16 %v471
    %v1185 = vunpack.c.h.b16 %v471
    %v1186 = vunpack.c.l.b16 %v472
    %v1187 = vunpack.c.l.b16 %v473
    %v1188 = vunpack.c.h.b16 %v473
    %v1189 = vunpack.c.l.b16 %v474
    %v1190 = vunpack.c.h.b16 %v474
    %v1191 = vunpack.c.l.b16 %v475
    %v1192 = vunpack.c.h.b16 %v475
    %v1193 = vunpack.c.l.b16 %v476
    %v1194 = vunpack.c.l.b16 %v477
    %v1195 = vunpack.c.h.b16 %v477
    %v1196 = vunpack.c.l.b16 %v478
    %v1197 = vunpack.c.h.b16 %v478
    %v1198 = vunpack.c.l.b16 %v479
    %v1199 = vunpack.c.h.b16 %v479
    %v1200 = vunpack.c.l.b16 %v480
    %v1201 = vunpack.c.l.b16 %v481
    %v1202 = vunpack.c.h.b16 %v481
    %v1203 = vunpack.c.l.b16 %v482
    %v1204 = vunpack.c.h.b16 %v482
    %v1205 = vunpack.c.l.b16 %v483
    %v1206 = vunpack.c.h.b16 %v483
    %v1207 = vunpack.c.l.b16 %v484
    %v1208 = vunpack.c.l.b16 %v485
    %v1209 = vunpack.c.h.b16 %v485
    %v1210 = vunpack.c.l.b16 %v486
    %v1211 = vunpack.c.h.b16 %v486
    %v1212 = vunpack.c.l.b16 %v487
    %v1213 = vunpack.c.h.b16 %v487
    %v1214 = vunpack.c.l.b16 %v488
    %v1215 = vunpack.c.l.b16 %v489
    %v1216 = vunpack.c.h.b16 %v489
    %v1217 = vunpack.c.l.b16 %v490
    %v1218 = vunpack.c.h.b16 %v490
    %v1219 = vunpack.c.l.b16 %v491
    %v1220 = vunpack.c.h.b16 %v491
    %v1221 = vunpack.c.l.b16 %v492
    %v1222 = vunpack.c.l.b16 %v493
    %v1223 = vunpack.c.h.b16 %v493
    %v1224 = vunpack.c.l.b16 %v494
    %v1225 = vunpack.c.h.b16 %v494
    %v1226 = vunpack.c.l.b16 %v495
    %v1227 = vunpack.c.h.b16 %v495
    %v1228 = vunpack.c.l.b16 %v496
    %v1229 = vunpack.c.l.b16 %v497
    %v1230 = vunpack.c.h.b16 %v497
    %v1231 = vunpack.c.l.b16 %v498
    %v1232 = vunpack.c.h.b16 %v498
    %v1233 = vunpack.c.l.b16 %v499
    %v1234 = vunpack.c.h.b16 %v499
    %v1235 = vunpack.c.l.b16 %v500
    %v1236 = vunpack.c.l.b16 %v501
    %v1237 = vunpack.c.h.b16 %v501
    %v1238 = vunpack.c.l.b16 %v502
    %v1239 = vunpack.c.h.b16 %v502
    %v1240 = vunpack.c.l.b16 %v503
    %v1241 = vunpack.c.h.b16 %v503
    %v1242 = vunpack.c.l.b16 %v504
    %v1243 = vunpack.c.l.b16 %v505
    %v1244 = vunpack.c.h.b16 %v505
    %v1245 = vunpack.c.l.b16 %v506
    %v1246 = vunpack.c.h.b16 %v506
    %v1247 = vunpack.c.l.b16 %v507
    %v1248 = vunpack.c.h.b16 %v507
    %v1249 = vunpack.c.l.b16 %v508
    %v1250 = vpack.c.b16 %v809, %v802
    %v1251 = vpack.c.b16 %v810, %v803
    %v1252 = vpack.c.b16 %v811, %v804
    %v1253 = vpack.c.b16 %v812, %v805
    %v1254 = vpack.c.b16 %v813, %v806
    %v1255 = vpack.c.b16 %v814, %v807
    %v1256 = vpack.c.b16 %v815, %v808
    %v1257 = vpack.c.b16 %v823, %v816
    %v1258 = vpack.c.b16 %v824, %v817
    %v1259 = vpack.c.b16 %v825, %v818
    %v1260 = vpack.c.b16 %v826, %v819
    %v1261 = vpack.c.b16 %v827, %v820
    %v1262 = vpack.c.b16 %v828, %v821
    %v1263 = vpack.c.b16 %v829, %v822
    %v1264 = vpack.c.b16 %v837, %v830
    %v1265 = vpack.c.b16 %v838, %v831
    %v1266 = vpack.c.b16 %v839, %v832
    %v1267 = vpack.c.b16 %v840, %v833
    %v1268 = vpack.c.b16 %v841, %v834
    %v1269 = vpack.c.b16 %v842, %v835
    %v1270 = vpack.c.b16 %v843, %v836
    %v1271 = vpack.c.b16 %v851, %v844
    %v1272 = vpack.c.b16 %v852, %v845
    %v1273 = vpack.c.b16 %v853, %v846
    %v1274 = vpack.c.b16 %v854, %v847
    %v1275 = vpack.c.b16 %v855, %v848
    %v1276 = vpack.c.b16 %v856, %v849
    %v1277 = vpack.c.b16 %v857, %v850
    %v1278 = vpack.c.b16 %v865, %v858
    %v1279 = vpack.c.b16 %v866, %v859
    %v1280 = vpack.c.b16 %v867, %v860
    %v1281 = vpack.c.b16 %v868, %v861
    %v1282 = vpack.c.b16 %v869, %v862
    %v1283 = vpack.c.b16 %v870, %v863
    %v1284 = vpack.c.b16 %v871, %v864
    %v1285 = vpack.c.b16 %v879, %v872
    %v1286 = vpack.c.b16 %v880, %v873
    %v1287 = vpack.c.b16 %v881, %v874
    %v1288 = vpack.c.b16 %v882, %v875
    %v1289 = vpack.c.b16 %v883, %v876
    %v1290 = vpack.c.b16 %v884, %v877
    %v1291 = vpack.c.b16 %v885, %v878
    %v1292 = vpack.c.b16 %v893, %v886
    %v1293 = vpack.c.b16 %v894, %v887
    %v1294 = vpack.c.b16 %v895, %v888
    %v1295 = vpack.c.b16 %v896, %v889
    %v1296 = vpack.c.b16 %v897, %v890
    %v1297 = vpack.c.b16 %v898, %v891
    %v1298 = vpack.c.b16 %v899, %v892
    %v1299 = vpack.c.b16 %v907, %v900
    %v1300 = vpack.c.b16 %v908, %v901
    %v1301 = vpack.c.b16 %v909, %v902
    %v1302 = vpack.c.b16 %v910, %v903
    %v1303 = vpack.c.b16 %v911, %v904
    %v1304 = vpack.c.b16 %v912, %v905
    %v1305 = vpack.c.b16 %v913, %v906
    %v1306 = vpack.c.b16 %v921, %v914
    %v1307 = vpack.c.b16 %v922, %v915
    %v1308 = vpack.c.b16 %v923, %v916
    %v1309 = vpack.c.b16 %v924, %v917
    %v1310 = vpack.c.b16 %v925, %v918
    %v1311 = vpack.c.b16 %v926, %v919
    %v1312 = vpack.c.b16 %v927, %v920
    %v1313 = vpack.c.b16 %v935, %v928
    %v1314 = vpack.c.b16 %v936, %v929
    %v1315 = vpack.c.b16 %v937, %v930
    %v1316 = vpack.c.b16 %v938, %v931
    %v1317 = vpack.c.b16 %v939, %v932
    %v1318 = vpack.c.b16 %v940, %v933
    %v1319 = vpack.c.b16 %v941, %v934
    %v1320 = vpack.c.b16 %v949, %v942
    %v1321 = vpack.c.b16 %v950, %v943
    %v1322 = vpack.c.b16 %v951, %v944
    %v1323 = vpack.c.b16 %v952, %v945
    %v1324 = vpack.c.b16 %v953, %v946
    %v1325 = vpack.c.b16 %v954, %v947
    %v1326 = vpack.c.b16 %v955, %v948
    %v1327 = vpack.c.b16 %v963, %v956
    %v1328 = vpack.c.b16 %v964, %v957
    %v1329 = vpack.c.b16 %v965, %v958
    %v1330 = vpack.c.b16 %v966, %v959
    %v1331 = vpack.c.b16 %v967, %v960
    %v1332 = vpack.c.b16 %v968, %v961
    %v1333 = vpack.c.b16 %v969, %v962
    %v1334 = vpack.c.b16 %v977, %v970
    %v1335 = vpack.c.b16 %v978, %v971
    %v1336 = vpack.c.b16 %v979, %v972
    %v1337 = vpack.c.b16 %v980, %v973
    %v1338 = vpack.c.b16 %v981, %v974
    %v1339 = vpack.c.b16 %v982, %v975
    %v1340 = vpack.c.b16 %v983, %v976
    %v1341 = vpack.c.b16 %v991, %v984
    %v1342 = vpack.c.b16 %v992, %v985
    %v1343 = vpack.c.b16 %v993, %v986
    %v1344 = vpack.c.b16 %v994, %v987
    %v1345 = vpack.c.b16 %v995, %v988
    %v1346 = vpack.c.b16 %v996, %v989
    %v1347 = vpack.c.b16 %v997, %v990
    %v1348 = vpack.c.b16 %v1005, %v998
    %v1349 = vpack.c.b16 %v1006, %v999
    %v1350 = vpack.c.b16 %v1007, %v1000
    %v1351 = vpack.c.b16 %v1008, %v1001
    %v1352 = vpack.c.b16 %v1009, %v1002
    %v1353 = vpack.c.b16 %v1010, %v1003
    %v1354 = vpack.c.b16 %v1011, %v1004
    %v1355 = vpack.c.b16 %v1019, %v1012
    %v1356 = vpack.c.b16 %v1020, %v1013
    %v1357 = vpack.c.b16 %v1021, %v1014
    %v1358 = vpack.c.b16 %v1022, %v1015
    %v1359 = vpack.c.b16 %v1023, %v1016
    %v1360 = vpack.c.b16 %v1024, %v1017
    %v1361 = vpack.c.b16 %v1025, %v1018
    %v1362 = vpack.c.b16 %v1033, %v1026
    %v1363 = vpack.c.b16 %v1034, %v1027
    %v1364 = vpack.c.b16 %v1035, %v1028
    %v1365 = vpack.c.b16 %v1036, %v1029
    %v1366 = vpack.c.b16 %v1037, %v1030
    %v1367 = vpack.c.b16 %v1038, %v1031
    %v1368 = vpack.c.b16 %v1039, %v1032
    %v1369 = vpack.c.b16 %v1047, %v1040
    %v1370 = vpack.c.b16 %v1048, %v1041
    %v1371 = vpack.c.b16 %v1049, %v1042
    %v1372 = vpack.c.b16 %v1050, %v1043
    %v1373 = vpack.c.b16 %v1051, %v1044
    %v1374 = vpack.c.b16 %v1052, %v1045
    %v1375 = vpack.c.b16 %v1053, %v1046
    %v1376 = vpack.c.b16 %v1061, %v1054
    %v1377 = vpack.c.b16 %v1062, %v1055
    %v1378 = vpack.c.b16 %v1063, %v1056
    %v1379 = vpack.c.b16 %v1064, %v1057
    %v1380 = vpack.c.b16 %v1065, %v1058
    %v1381 = vpack.c.b16 %v1066, %v1059
    %v1382 = vpack.c.b16 %v1067, %v1060
    %v1383 = vpack.c.b16 %v1075, %v1068
    %v1384 = vpack.c.b16 %v1076, %v1069
    %v1385 = vpack.c.b16 %v1077, %v1070
    %v1386 = vpack.c.b16 %v1078, %v1071
    %v1387 = vpack.c.b16 %v1079, %v1072
    %v1388 = vpack.c.b16 %v1080, %v1073
    %v1389 = vpack.c.b16 %v1081, %v1074
    %v1390 = vpack.c.b16 %v1089, %v1082
    %v1391 = vpack.c.b16 %v1090, %v1083
    %v1392 = vpack.c.b16 %v1091, %v1084
    %v1393 = vpack.c.b16 %v1092, %v1085
    %v1394 = vpack.c.b16 %v1093, %v1086
    %v1395 = vpack.c.b16 %v1094, %v1087
    %v1396 = vpack.c.b16 %v1095, %v1088
    %v1397 = vpack.c.b16 %v1103, %v1096
    %v1398 = vpack.c.b16 %v1104, %v1097
    %v1399 = vpack.c.b16 %v1105, %v1098
    %v1400 = vpack.c.b16 %v1106, %v1099
    %v1401 = vpack.c.b16 %v1107, %v1100
    %v1402 = vpack.c.b16 %v1108, %v1101
    %v1403 = vpack.c.b16 %v1109, %v1102
    %v1404 = vpack.c.b16 %v1117, %v1110
    %v1405 = vpack.c.b16 %v1118, %v1111
    %v1406 = vpack.c.b16 %v1119, %v1112
    %v1407 = vpack.c.b16 %v1120, %v1113
    %v1408 = vpack.c.b16 %v1121, %v1114
    %v1409 = vpack.c.b16 %v1122, %v1115
    %v1410 = vpack.c.b16 %v1123, %v1116
    %v1411 = vpack.c.b16 %v1131, %v1124
    %v1412 = vpack.c.b16 %v1132, %v1125
    %v1413 = vpack.c.b16 %v1133, %v1126
    %v1414 = vpack.c.b16 %v1134, %v1127
    %v1415 = vpack.c.b16 %v1135, %v1128
    %v1416 = vpack.c.b16 %v1136, %v1129
    %v1417 = vpack.c.b16 %v1137, %v1130
    %v1418 = vpack.c.b16 %v1145, %v1138
    %v1419 = vpack.c.b16 %v1146, %v1139
    %v1420 = vpack.c.b16 %v1147, %v1140
    %v1421 = vpack.c.b16 %v1148, %v1141
    %v1422 = vpack.c.b16 %v1149, %v1142
    %v1423 = vpack.c.b16 %v1150, %v1143
    %v1424 = vpack.c.b16 %v1151, %v1144
    %v1425 = vpack.c.b16 %v1159, %v1152
    %v1426 = vpack.c.b16 %v1160, %v1153
    %v1427 = vpack.c.b16 %v1161, %v1154
    %v1428 = vpack.c.b16 %v1162, %v1155
    %v1429 = vpack.c.b16 %v1163, %v1156
    %v1430 = vpack.c.b16 %v1164, %v1157
    %v1431 = vpack.c.b16 %v1165, %v1158
    %v1432 = vpack.c.b16 %v1173, %v1166
    %v1433 = vpack.c.b16 %v1174, %v1167
    %v1434 = vpack.c.b16 %v1175, %v1168
    %v1435 = vpack.c.b16 %v1176, %v1169
    %v1436 = vpack.c.b16 %v1177, %v1170
    %v1437 = vpack.c.b16 %v1178, %v1171
    %v1438 = vpack.c.b16 %v1179, %v1172
    %v1439 = vpack.c.b16 %v1187, %v1180
    %v1440 = vpack.c.b16 %v1188, %v1181
    %v1441 = vpack.c.b16 %v1189, %v1182
    %v1442 = vpack.c.b16 %v1190, %v1183
    %v1443 = vpack.c.b16 %v1191, %v1184
    %v1444 = vpack.c.b16 %v1192, %v1185
    %v1445 = vpack.c.b16 %v1193, %v1186
    %v1446 = vpack.c.b16 %v1201, %v1194
    %v1447 = vpack.c.b16 %v1202, %v1195
    %v1448 = vpack.c.b16 %v1203, %v1196
    %v1449 = vpack.c.b16 %v1204, %v1197
    %v1450 = vpack.c.b16 %v1205, %v1198
    %v1451 = vpack.c.b16 %v1206, %v1199
    %v1452 = vpack.c.b16 %v1207, %v1200
    %v1453 = vpack.c.b16 %v1215, %v1208
    %v1454 = vpack.c.b16 %v1216, %v1209
    %v1455 = vpack.c.b16 %v1217, %v1210
    %v1456 = vpack.c.b16 %v1218, %v1211
    %v1457 = vpack.c.b16 %v1219, %v1212
    %v1458 = vpack.c.b16 %v1220, %v1213
    %v1459 = vpack.c.b16 %v1221, %v1214
    %v1460 = vpack.c.b16 %v1229, %v1222
    %v1461 = vpack.c.b16 %v1230, %v1223
    %v1462 = vpack.c.b16 %v1231, %v1224
    %v1463 = vpack.c.b16 %v1232, %v1225
    %v1464 = vpack.c.b16 %v1233, %v1226
    %v1465 = vpack.c.b16 %v1234, %v1227
    %v1466 = vpack.c.b16 %v1235, %v1228
    %v1467 = vpack.c.b16 %v1243, %v1236
    %v1468 = vpack.c.b16 %v1244, %v1237
    %v1469 = vpack.c.b16 %v1245, %v1238
    %v1470 = vpack.c.b16 %v1246, %v1239
    %v1471 = vpack.c.b16 %v1247, %v1240
    %v1472 = vpack.c.b16 %v1248, %v1241
    %v1473 = vpack.c.b16 %v1249, %v1242
    %1698 = vmatprep.subr.bf16.mxu0 %v1251
    %1699 = vmatpush1.bf16.msra.mxu0 %v1250
    %1700 = vmatprep.subr.bf16.mxu0 %v1258
    %1701 = vmatpush1.bf16.msra.mxu0 %v1257
    %1702 = vmatprep.subr.bf16.mxu0 %v1265
    %1703 = vmatpush1.bf16.msra.mxu0 %v1264
    %1704 = vmatprep.subr.bf16.mxu0 %v1272
    %1705 = vmatpush1.bf16.msra.mxu0 %v1271
    %1706 = vmatprep.subr.bf16.mxu0 %v1279
    %1707 = vmatpush1.bf16.msra.mxu0 %v1278
    %1708 = vmatprep.subr.bf16.mxu0 %v1286
    %1709 = vmatpush1.bf16.msra.mxu0 %v1285
    %1710 = vmatprep.subr.bf16.mxu0 %v1293
    %1711 = vmatpush1.bf16.msra.mxu0 %v1292
    %1712 = vmatprep.subr.bf16.mxu0 %v1300
    %1713 = vmatpush1.bf16.msra.mxu0 %v1299
    %1714 = vmatprep.subr.bf16.mxu0 %v1307
    %1715 = vmatpush1.bf16.msra.mxu0 %v1306
    %1716 = vmatprep.subr.bf16.mxu0 %v1314
    %1717 = vmatpush1.bf16.msra.mxu0 %v1313
    %1718 = vmatprep.subr.bf16.mxu0 %v1321
    %1719 = vmatpush1.bf16.msra.mxu0 %v1320
    %1720 = vmatprep.subr.bf16.mxu0 %v1328
    %1721 = vmatpush1.bf16.msra.mxu0 %v1327
    %1722 = vmatprep.subr.bf16.mxu0 %v1335
    %1723 = vmatpush1.bf16.msra.mxu0 %v1334
    %1724 = vmatprep.subr.bf16.mxu0 %v1342
    %1725 = vmatpush1.bf16.msra.mxu0 %v1341
    %1726 = vmatprep.subr.bf16.mxu0 %v1349
    %1727 = vmatpush1.bf16.msra.mxu0 %v1348
    %1728 = vmatprep.subr.bf16.mxu0 %v1356
    %1729 = vmatpush1.bf16.msra.mxu0 %v1355
    %1730 = vmatprep.mubr.bf16.mxu0 %v250
    %1731 = vmatmul.mubr.bf16.gmra.mrb[0].mxu0 %v249
    %v1732 = vpop.f32.mrb[0].mxu0
    %v1733 = vadd.f32 %v514, %v1732
    %v1734 = vpop.f32.mrb[0].mxu0
    %v1735 = vadd.f32 %v518, %v1734
    %v1736 = vpop.f32.mrb[0].mxu0
    %v1737 = vadd.f32 %v514, %v1736
    %v1738 = vpop.f32.mrb[0].mxu0
    %v1739 = vadd.f32 %v518, %v1738
    %1740 = vdwg.mxu0
    %1741 = vmatprep.subr.bf16.mxu0 %v1363
    %1742 = vmatpush1.bf16.msra.mxu0 %v1362
    %1743 = vmatprep.subr.bf16.mxu0 %v1370
    %1744 = vmatpush1.bf16.msra.mxu0 %v1369
    %1745 = vmatprep.subr.bf16.mxu0 %v1377
    %1746 = vmatpush1.bf16.msra.mxu0 %v1376
    %1747 = vmatprep.subr.bf16.mxu0 %v1384
    %1748 = vmatpush1.bf16.msra.mxu0 %v1383
    %1749 = vmatprep.subr.bf16.mxu0 %v1391
    %1750 = vmatpush1.bf16.msra.mxu0 %v1390
    %1751 = vmatprep.subr.bf16.mxu0 %v1398
    %1752 = vmatpush1.bf16.msra.mxu0 %v1397
    %1753 = vmatprep.subr.bf16.mxu0 %v1405
    %1754 = vmatpush1.bf16.msra.mxu0 %v1404
    %1755 = vmatprep.subr.bf16.mxu0 %v1412
    %1756 = vmatpush1.bf16.msra.mxu0 %v1411
    %1757 = vmatprep.subr.bf16.mxu0 %v1419
    %1758 = vmatpush1.bf16.msra.mxu0 %v1418
    %1759 = vmatprep.subr.bf16.mxu0 %v1426
    %1760 = vmatpush1.bf16.msra.mxu0 %v1425
    %1761 = vmatprep.subr.bf16.mxu0 %v1433
    %1762 = vmatpush1.bf16.msra.mxu0 %v1432
    %1763 = vmatprep.subr.bf16.mxu0 %v1440
    %1764 = vmatpush1.bf16.msra.mxu0 %v1439
    %1765 = vmatprep.subr.bf16.mxu0 %v1447
    %1766 = vmatpush1.bf16.msra.mxu0 %v1446
    %1767 = vmatprep.subr.bf16.mxu0 %v1454
    %1768 = vmatpush1.bf16.msra.mxu0 %v1453
    %1769 = vmatprep.subr.bf16.mxu0 %v1461
    %1770 = vmatpush1.bf16.msra.mxu0 %v1460
    %1771 = vmatprep.subr.bf16.mxu0 %v1468
    %1772 = vmatpush1.bf16.msra.mxu0 %v1467
    %1773 = vmatprep.mubr.bf16.mxu0 %v252
    %1774 = vmatmul.mubr.bf16.gmra.mrb[0].mxu0 %v251
    %v1775 = vpop.f32.mrb[0].mxu0
    %v1776 = vadd.f32 %v1733, %v1775
    %v1777 = vpop.f32.mrb[0].mxu0
    %v1778 = vadd.f32 %v1735, %v1777
    %v1779 = vpop.f32.mrb[0].mxu0
    %v1780 = vadd.f32 %v1737, %v1779
    %v1781 = vpop.f32.mrb[0].mxu0
    %v1782 = vadd.f32 %v1739, %v1781
    %1783 = vdwg.mxu0
    %1784 = vmatprep.subr.bf16.mxu0 %v1253
    %1785 = vmatpush1.bf16.msra.mxu0 %v1252
    %1786 = vmatprep.subr.bf16.mxu0 %v1260
    %1787 = vmatpush1.bf16.msra.mxu0 %v1259
    %1788 = vmatprep.subr.bf16.mxu0 %v1267
    %1789 = vmatpush1.bf16.msra.mxu0 %v1266
    %1790 = vmatprep.subr.bf16.mxu0 %v1274
    %1791 = vmatpush1.bf16.msra.mxu0 %v1273
    %1792 = vmatprep.subr.bf16.mxu0 %v1281
    %1793 = vmatpush1.bf16.msra.mxu0 %v1280
    %1794 = vmatprep.subr.bf16.mxu0 %v1288
    %1795 = vmatpush1.bf16.msra.mxu0 %v1287
    %1796 = vmatprep.subr.bf16.mxu0 %v1295
    %1797 = vmatpush1.bf16.msra.mxu0 %v1294
    %1798 = vmatprep.subr.bf16.mxu0 %v1302
    %1799 = vmatpush1.bf16.msra.mxu0 %v1301
    %1800 = vmatprep.subr.bf16.mxu0 %v1309
    %1801 = vmatpush1.bf16.msra.mxu0 %v1308
    %1802 = vmatprep.subr.bf16.mxu0 %v1316
    %1803 = vmatpush1.bf16.msra.mxu0 %v1315
    %1804 = vmatprep.subr.bf16.mxu0 %v1323
    %1805 = vmatpush1.bf16.msra.mxu0 %v1322
    %1806 = vmatprep.subr.bf16.mxu0 %v1330
    %1807 = vmatpush1.bf16.msra.mxu0 %v1329
    %1808 = vmatprep.subr.bf16.mxu0 %v1337
    %1809 = vmatpush1.bf16.msra.mxu0 %v1336
    %1810 = vmatprep.subr.bf16.mxu0 %v1344
    %1811 = vmatpush1.bf16.msra.mxu0 %v1343
    %1812 = vmatprep.subr.bf16.mxu0 %v1351
    %1813 = vmatpush1.bf16.msra.mxu0 %v1350
    %1814 = vmatprep.subr.bf16.mxu0 %v1358
    %1815 = vmatpush1.bf16.msra.mxu0 %v1357
    %1816 = vmatprep.mubr.bf16.mxu0 %v250
    %1817 = vmatmul.mubr.bf16.gmra.mrb[0].mxu0 %v249
    %v1818 = vpop.f32.mrb[0].mxu0
    %v1819 = vadd.f32 %v522, %v1818
    %v1820 = vpop.f32.mrb[0].mxu0
    %v1821 = vadd.f32 %v526, %v1820
    %v1822 = vpop.f32.mrb[0].mxu0
    %v1823 = vadd.f32 %v522, %v1822
    %v1824 = vpop.f32.mrb[0].mxu0
    %v1825 = vadd.f32 %v526, %v1824
    %1826 = vdwg.mxu0
    %1827 = vmatprep.subr.bf16.mxu0 %v1365
    %1828 = vmatpush1.bf16.msra.mxu0 %v1364
    %1829 = vmatprep.subr.bf16.mxu0 %v1372
    %1830 = vmatpush1.bf16.msra.mxu0 %v1371
    %1831 = vmatprep.subr.bf16.mxu0 %v1379
    %1832 = vmatpush1.bf16.msra.mxu0 %v1378
    %1833 = vmatprep.subr.bf16.mxu0 %v1386
    %1834 = vmatpush1.bf16.msra.mxu0 %v1385
    %1835 = vmatprep.subr.bf16.mxu0 %v1393
    %1836 = vmatpush1.bf16.msra.mxu0 %v1392
    %1837 = vmatprep.subr.bf16.mxu0 %v1400
    %1838 = vmatpush1.bf16.msra.mxu0 %v1399
    %1839 = vmatprep.subr.bf16.mxu0 %v1407
    %1840 = vmatpush1.bf16.msra.mxu0 %v1406
    %1841 = vmatprep.subr.bf16.mxu0 %v1414
    %1842 = vmatpush1.bf16.msra.mxu0 %v1413
    %1843 = vmatprep.subr.bf16.mxu0 %v1421
    %1844 = vmatpush1.bf16.msra.mxu0 %v1420
    %1845 = vmatprep.subr.bf16.mxu0 %v1428
    %1846 = vmatpush1.bf16.msra.mxu0 %v1427
    %1847 = vmatprep.subr.bf16.mxu0 %v1435
    %1848 = vmatpush1.bf16.msra.mxu0 %v1434
    %1849 = vmatprep.subr.bf16.mxu0 %v1442
    %1850 = vmatpush1.bf16.msra.mxu0 %v1441
    %1851 = vmatprep.subr.bf16.mxu0 %v1449
    %1852 = vmatpush1.bf16.msra.mxu0 %v1448
    %1853 = vmatprep.subr.bf16.mxu0 %v1456
    %1854 = vmatpush1.bf16.msra.mxu0 %v1455
    %1855 = vmatprep.subr.bf16.mxu0 %v1463
    %1856 = vmatpush1.bf16.msra.mxu0 %v1462
    %1857 = vmatprep.subr.bf16.mxu0 %v1470
    %1858 = vmatpush1.bf16.msra.mxu0 %v1469
    %1859 = vmatprep.mubr.bf16.mxu0 %v252
    %1860 = vmatmul.mubr.bf16.gmra.mrb[0].mxu0 %v251
    %v1861 = vpop.f32.mrb[0].mxu0
    %v1862 = vadd.f32 %v1819, %v1861
    %v1863 = vpop.f32.mrb[0].mxu0
    %v1864 = vadd.f32 %v1821, %v1863
    %v1865 = vpop.f32.mrb[0].mxu0
    %v1866 = vadd.f32 %v1823, %v1865
    %v1867 = vpop.f32.mrb[0].mxu0
    %v1868 = vadd.f32 %v1825, %v1867
    %1869 = vdwg.mxu0
    %1870 = vmatprep.subr.bf16.mxu0 %v1255
    %1871 = vmatpush1.bf16.msra.mxu0 %v1254
    %1872 = vmatprep.subr.bf16.mxu0 %v1262
    %1873 = vmatpush1.bf16.msra.mxu0 %v1261
    %1874 = vmatprep.subr.bf16.mxu0 %v1269
    %1875 = vmatpush1.bf16.msra.mxu0 %v1268
    %1876 = vmatprep.subr.bf16.mxu0 %v1276
    %1877 = vmatpush1.bf16.msra.mxu0 %v1275
    %1878 = vmatprep.subr.bf16.mxu0 %v1283
    %1879 = vmatpush1.bf16.msra.mxu0 %v1282
    %1880 = vmatprep.subr.bf16.mxu0 %v1290
    %1881 = vmatpush1.bf16.msra.mxu0 %v1289
    %1882 = vmatprep.subr.bf16.mxu0 %v1297
    %1883 = vmatpush1.bf16.msra.mxu0 %v1296
    %1884 = vmatprep.subr.bf16.mxu0 %v1304
    %1885 = vmatpush1.bf16.msra.mxu0 %v1303
    %1886 = vmatprep.subr.bf16.mxu0 %v1311
    %1887 = vmatpush1.bf16.msra.mxu0 %v1310
    %1888 = vmatprep.subr.bf16.mxu0 %v1318
    %1889 = vmatpush1.bf16.msra.mxu0 %v1317
    %1890 = vmatprep.subr.bf16.mxu0 %v1325
    %1891 = vmatpush1.bf16.msra.mxu0 %v1324
    %1892 = vmatprep.subr.bf16.mxu0 %v1332
    %1893 = vmatpush1.bf16.msra.mxu0 %v1331
    %1894 = vmatprep.subr.bf16.mxu0 %v1339
    %1895 = vmatpush1.bf16.msra.mxu0 %v1338
    %1896 = vmatprep.subr.bf16.mxu0 %v1346
    %1897 = vmatpush1.bf16.msra.mxu0 %v1345
    %1898 = vmatprep.subr.bf16.mxu0 %v1353
    %1899 = vmatpush1.bf16.msra.mxu0 %v1352
    %1900 = vmatprep.subr.bf16.mxu0 %v1360
    %1901 = vmatpush1.bf16.msra.mxu0 %v1359
    %1902 = vmatprep.mubr.bf16.mxu0 %v250
    %1903 = vmatmul.mubr.bf16.gmra.mrb[0].mxu0 %v249
    %v1904 = vpop.f32.mrb[0].mxu0
    %v1905 = vadd.f32 %v530, %v1904
    %v1906 = vpop.f32.mrb[0].mxu0
    %v1907 = vadd.f32 %v534, %v1906
    %v1908 = vpop.f32.mrb[0].mxu0
    %v1909 = vadd.f32 %v530, %v1908
    %v1910 = vpop.f32.mrb[0].mxu0
    %v1911 = vadd.f32 %v534, %v1910
    %1912 = vdwg.mxu0
    %1913 = vmatprep.subr.bf16.mxu0 %v1367
    %1914 = vmatpush1.bf16.msra.mxu0 %v1366
    %1915 = vmatprep.subr.bf16.mxu0 %v1374
    %1916 = vmatpush1.bf16.msra.mxu0 %v1373
    %1917 = vmatprep.subr.bf16.mxu0 %v1381
    %1918 = vmatpush1.bf16.msra.mxu0 %v1380
    %1919 = vmatprep.subr.bf16.mxu0 %v1388
    %1920 = vmatpush1.bf16.msra.mxu0 %v1387
    %1921 = vmatprep.subr.bf16.mxu0 %v1395
    %1922 = vmatpush1.bf16.msra.mxu0 %v1394
    %1923 = vmatprep.subr.bf16.mxu0 %v1402
    %1924 = vmatpush1.bf16.msra.mxu0 %v1401
    %1925 = vmatprep.subr.bf16.mxu0 %v1409
    %1926 = vmatpush1.bf16.msra.mxu0 %v1408
    %1927 = vmatprep.subr.bf16.mxu0 %v1416
    %1928 = vmatpush1.bf16.msra.mxu0 %v1415
    %1929 = vmatprep.subr.bf16.mxu0 %v1423
    %1930 = vmatpush1.bf16.msra.mxu0 %v1422
    %1931 = vmatprep.subr.bf16.mxu0 %v1430
    %1932 = vmatpush1.bf16.msra.mxu0 %v1429
    %1933 = vmatprep.subr.bf16.mxu0 %v1437
    %1934 = vmatpush1.bf16.msra.mxu0 %v1436
    %1935 = vmatprep.subr.bf16.mxu0 %v1444
    %1936 = vmatpush1.bf16.msra.mxu0 %v1443
    %1937 = vmatprep.subr.bf16.mxu0 %v1451
    %1938 = vmatpush1.bf16.msra.mxu0 %v1450
    %1939 = vmatprep.subr.bf16.mxu0 %v1458
    %1940 = vmatpush1.bf16.msra.mxu0 %v1457
    %1941 = vmatprep.subr.bf16.mxu0 %v1465
    %1942 = vmatpush1.bf16.msra.mxu0 %v1464
    %1943 = vmatprep.subr.bf16.mxu0 %v1472
    %1944 = vmatpush1.bf16.msra.mxu0 %v1471
    %1945 = vmatprep.mubr.bf16.mxu0 %v252
    %1946 = vmatmul.mubr.bf16.gmra.mrb[0].mxu0 %v251
    %v1947 = vpop.f32.mrb[0].mxu0
    %v1948 = vadd.f32 %v1905, %v1947
    %v1949 = vpop.f32.mrb[0].mxu0
    %v1950 = vadd.f32 %v1907, %v1949
    %v1951 = vpop.f32.mrb[0].mxu0
    %v1952 = vadd.f32 %v1909, %v1951
    %v1953 = vpop.f32.mrb[0].mxu0
    %v1954 = vadd.f32 %v1911, %v1953
    %1955 = vdwg.mxu0
    %1956 = vmatprep.subr.bf16.mxu0 0
    %1957 = vmatpush1.bf16.msra.mxu0 %v1256
    %1958 = vmatprep.subr.bf16.mxu0 0
    %1959 = vmatpush1.bf16.msra.mxu0 %v1263
    %1960 = vmatprep.subr.bf16.mxu0 0
    %1961 = vmatpush1.bf16.msra.mxu0 %v1270
    %1962 = vmatprep.subr.bf16.mxu0 0
    %1963 = vmatpush1.bf16.msra.mxu0 %v1277
    %1964 = vmatprep.subr.bf16.mxu0 0
    %1965 = vmatpush1.bf16.msra.mxu0 %v1284
    %1966 = vmatprep.subr.bf16.mxu0 0
    %1967 = vmatpush1.bf16.msra.mxu0 %v1291
    %1968 = vmatprep.subr.bf16.mxu0 0
    %1969 = vmatpush1.bf16.msra.mxu0 %v1298
    %1970 = vmatprep.subr.bf16.mxu0 0
    %1971 = vmatpush1.bf16.msra.mxu0 %v1305
    %1972 = vmatprep.subr.bf16.mxu0 0
    %1973 = vmatpush1.bf16.msra.mxu0 %v1312
    %1974 = vmatprep.subr.bf16.mxu0 0
    %1975 = vmatpush1.bf16.msra.mxu0 %v1319
    %1976 = vmatprep.subr.bf16.mxu0 0
    %1977 = vmatpush1.bf16.msra.mxu0 %v1326
    %1978 = vmatprep.subr.bf16.mxu0 0
    %1979 = vmatpush1.bf16.msra.mxu0 %v1333
    %1980 = vmatprep.subr.bf16.mxu0 0
    %1981 = vmatpush1.bf16.msra.mxu0 %v1340
    %1982 = vmatprep.subr.bf16.mxu0 0
    %1983 = vmatpush1.bf16.msra.mxu0 %v1347
    %1984 = vmatprep.subr.bf16.mxu0 0
    %1985 = vmatpush1.bf16.msra.mxu0 %v1354
    %1986 = vmatprep.subr.bf16.mxu0 0
    %1987 = vmatpush1.bf16.msra.mxu0 %v1361
    %1988 = vmatprep.mubr.bf16.mxu0 %v250
    %1989 = vmatmul.mubr.bf16.gmra.mrb[0].mxu0 %v249
    %v1990 = vpop.f32.mrb[0].mxu0
    %v1991 = vadd.f32 %v538, %v1990
    %v1992 = vpop.f32.mrb[0].mxu0
    %v1993 = vpop.f32.mrb[0].mxu0
    %v1994 = vadd.f32 %v538, %v1993
    %v1995 = vpop.f32.mrb[0].mxu0
    %1996 = vdwg.mxu0
    %1997 = vmatprep.subr.bf16.mxu0 0
    %1998 = vmatpush1.bf16.msra.mxu0 %v1368
    %1999 = vmatprep.subr.bf16.mxu0 0
    %2000 = vmatpush1.bf16.msra.mxu0 %v1375
    %2001 = vmatprep.subr.bf16.mxu0 0
    %2002 = vmatpush1.bf16.msra.mxu0 %v1382
    %2003 = vmatprep.subr.bf16.mxu0 0
    %2004 = vmatpush1.bf16.msra.mxu0 %v1389
    %2005 = vmatprep.subr.bf16.mxu0 0
    %2006 = vmatpush1.bf16.msra.mxu0 %v1396
    %2007 = vmatprep.subr.bf16.mxu0 0
    %2008 = vmatpush1.bf16.msra.mxu0 %v1403
    %2009 = vmatprep.subr.bf16.mxu0 0
    %2010 = vmatpush1.bf16.msra.mxu0 %v1410
    %2011 = vmatprep.subr.bf16.mxu0 0
    %2012 = vmatpush1.bf16.msra.mxu0 %v1417
    %2013 = vmatprep.subr.bf16.mxu0 0
    %2014 = vmatpush1.bf16.msra.mxu0 %v1424
    %2015 = vmatprep.subr.bf16.mxu0 0
    %2016 = vmatpush1.bf16.msra.mxu0 %v1431
    %2017 = vmatprep.subr.bf16.mxu0 0
    %2018 = vmatpush1.bf16.msra.mxu0 %v1438
    %2019 = vmatprep.subr.bf16.mxu0 0
    %2020 = vmatpush1.bf16.msra.mxu0 %v1445
    %2021 = vmatprep.subr.bf16.mxu0 0
    %2022 = vmatpush1.bf16.msra.mxu0 %v1452
    %2023 = vmatprep.subr.bf16.mxu0 0
    %2024 = vmatpush1.bf16.msra.mxu0 %v1459
    %2025 = vmatprep.subr.bf16.mxu0 0
    %2026 = vmatpush1.bf16.msra.mxu0 %v1466
    %2027 = vmatprep.subr.bf16.mxu0 0
    %2028 = vmatpush1.bf16.msra.mxu0 %v1473
    %2029 = vmatprep.mubr.bf16.mxu0 %v252
    %2030 = vmatmul.mubr.bf16.gmra.mrb[0].mxu0 %v251
    %v2031 = vpop.f32.mrb[0].mxu0
    %v2032 = vadd.f32 %v1991, %v2031
    %v2033 = vpop.f32.mrb[0].mxu0
    %v2034 = vpop.f32.mrb[0].mxu0
    %v2035 = vadd.f32 %v1994, %v2034
    %v2036 = vpop.f32.mrb[0].mxu0
    %2037 = vdwg.mxu0
    %v2038 = vsub.f32 0.0, %v1776
    %v2039 = vsub.f32 0.0, %v1778
    %v2040 = vsub.f32 0.0, %v1862
    %v2041 = vsub.f32 0.0, %v1864
    %v2042 = vsub.f32 0.0, %v1948
    %v2043 = vsub.f32 0.0, %v1950
    %v2044 = vsub.f32 0.0, %v2032
    %v2045 = vsub.f32 0.0, %v1780
    %v2046 = vsub.f32 0.0, %v1782
    %v2047 = vsub.f32 0.0, %v1866
    %v2048 = vsub.f32 0.0, %v1868
    %v2049 = vsub.f32 0.0, %v1952
    %v2050 = vsub.f32 0.0, %v1954
    %v2051 = vsub.f32 0.0, %v2035
    %v2052 = vmul.f32 %v2038, 1.442695
    %v2053 = vpow.pop %v2052
    %v2054 = vmul.f32 %v2039, 1.442695
    %v2055 = vpow.pop %v2054
    %v2056 = vmul.f32 %v2040, 1.442695
    %v2057 = vpow.pop %v2056
    %v2058 = vmul.f32 %v2041, 1.442695
    %v2059 = vpow.pop %v2058
    %v2060 = vmul.f32 %v2042, 1.442695
    %v2061 = vpow.pop %v2060
    %v2062 = vmul.f32 %v2043, 1.442695
    %v2063 = vpow.pop %v2062
    %v2064 = vmul.f32 %v2044, 1.442695
    %v2065 = vpow.pop %v2064
    %v2066 = vmul.f32 %v2045, 1.442695
    %v2067 = vpow.pop %v2066
    %v2068 = vmul.f32 %v2046, 1.442695
    %v2069 = vpow.pop %v2068
    %v2070 = vmul.f32 %v2047, 1.442695
    %v2071 = vpow.pop %v2070
    %v2072 = vmul.f32 %v2048, 1.442695
    %v2073 = vpow.pop %v2072
    %v2074 = vmul.f32 %v2049, 1.442695
    %v2075 = vpow.pop %v2074
    %v2076 = vmul.f32 %v2050, 1.442695
    %v2077 = vpow.pop %v2076
    %v2078 = vmul.f32 %v2051, 1.442695
    %v2079 = vpow.pop %v2078
    %v2080 = vadd.f32 %v2053, 1.0
    %v2081 = vadd.f32 %v2055, 1.0
    %v2082 = vadd.f32 %v2057, 1.0
    %v2083 = vadd.f32 %v2059, 1.0
    %v2084 = vadd.f32 %v2061, 1.0
    %v2085 = vadd.f32 %v2063, 1.0
    %v2086 = vadd.f32 %v2065, 1.0
    %v2087 = vadd.f32 %v2067, 1.0
    %v2088 = vadd.f32 %v2069, 1.0
    %v2089 = vadd.f32 %v2071, 1.0
    %v2090 = vadd.f32 %v2073, 1.0
    %v2091 = vadd.f32 %v2075, 1.0
    %v2092 = vadd.f32 %v2077, 1.0
    %v2093 = vadd.f32 %v2079, 1.0
    %v2094 = vrcp.pop %v2080
    %v2095 = vrcp.pop %v2081
    %v2096 = vrcp.pop %v2082
    %v2097 = vrcp.pop %v2083
    %v2098 = vrcp.pop %v2084
    %v2099 = vrcp.pop %v2085
    %v2100 = vrcp.pop %v2086
    %v2101 = vrcp.pop %v2087
    %v2102 = vrcp.pop %v2088
    %v2103 = vrcp.pop %v2089
    %v2104 = vrcp.pop %v2090
    %v2105 = vrcp.pop %v2091
    %v2106 = vrcp.pop %v2092
    %v2107 = vrcp.pop %v2093
    %v2108 = vpack.c.bf16 %v2101, %v2094
    %v2109 = vpack.c.bf16 %v2102, %v2095
    %v2110 = vpack.c.bf16 %v2103, %v2096
    %v2111 = vpack.c.bf16 %v2104, %v2097
    %v2112 = vpack.c.bf16 %v2105, %v2098
    %v2113 = vpack.c.bf16 %v2106, %v2099
    %v2114 = vpack.c.bf16 %v2107, %v2100
    %v2122 = vunpack.c.l.b16 %v2108
    %v2123 = vunpack.c.l.b16 %v2109
    %v2124 = vunpack.c.l.b16 %v2110
    %v2125 = vunpack.c.l.b16 %v2111
    %v2126 = vunpack.c.l.b16 %v2112
    %v2127 = vunpack.c.l.b16 %v2113
    %v2128 = vunpack.c.l.b16 %v2114
    %v2129 = vunpack.c.h.b16 %v2108
    %v2130 = vunpack.c.h.b16 %v2109
    %v2131 = vunpack.c.h.b16 %v2110
    %v2132 = vunpack.c.h.b16 %v2111
    %v2133 = vunpack.c.h.b16 %v2112
    %v2134 = vunpack.c.h.b16 %v2113
    %v2135 = vunpack.c.h.b16 %v2114
    %v2136 = vpack.c.b16 %v2123, %v2122
    %v2137 = vpack.c.b16 %v2125, %v2124
    %v2138 = vpack.c.b16 %v2127, %v2126
    %v2139 = vpack.c.b16 %v2128, %v2128
    %v2140 = vpack.c.b16 %v2130, %v2129
    %v2141 = vpack.c.b16 %v2132, %v2131
    %v2142 = vpack.c.b16 %v2134, %v2133
    %v2143 = vpack.c.b16 %v2135, %v2135
    %2152 = vst [vmem:[#allocation8] sm:$0xff] %v2136
    %2153 = vst [vmem:[#allocation8 + $0x8] sm:$0xff] %v2137
    %2154 = vst [vmem:[#allocation8 + $0x10] sm:$0xff] %v2138
    %2155 = vst [vmem:[#allocation8 + $0x18] sm:$0xf] %v2139
    %2156 = vst [vmem:[#allocation8 + $0x1c] sm:$0xff] %v2140
    %2157 = vst [vmem:[#allocation8 + $0x24] sm:$0xff] %v2141
    %2158 = vst [vmem:[#allocation8 + $0x2c] sm:$0xff] %v2142
    %2159 = vst [vmem:[#allocation8 + $0x34] sm:$0xf] %v2143
    // Predicated region
    $region34: #{tpu_custom_call.1} parent=1 // pred_check
      _
    $region35: #{tpu_custom_call.1} parent=1 // pred_check_branch
      %2161 = sbr.rel (0) target = $region37
    $region36: #{tpu_custom_call.1} parent=1 // pred_region
      %s2163 = ssub.s32 896, 896
      %2164 = vsyncadd [#allocation4], %s2163
      %s2165 = sshll.u32 [#allocation8], 4
      %s2166 = int_to_ptr.vmem [resolvable:$true] %s2165
      %2171 = dma.vmem_to_hbm [thread:$0]  %s2166, 896, %s5, [#allocation4], 448, 448, 28
    $region37: #{tpu_custom_call.1} parent=1 // pred_fallthru
      _
    // Predicated region
    $region38: #{tpu_custom_call.1} parent=1 // pred_check
      _
    $region39: #{tpu_custom_call.1} parent=1 // pred_check_branch
      %2173 = sbr.rel (0) target = $region41
    $region40: #{tpu_custom_call.1} parent=1 // pred_region
      %2174 = dma.done [#allocation4], 896
    $region41: #{tpu_custom_call.1} parent=1 // pred_fallthru
      _
    %2175 = vsyncpa [#allocation3], 1
    %2176 = vsyncpa [#allocation6], 1
    %2177 = vsyncpa [#allocation4], 1

</llo_original>
